<compile_context>
chip_gen: v6e
topology: v6e:2x2x1
jax: 0.10.0
libtpu: 0.0.40
codegen_flags: <defaults>
</compile_context>

<pallas_src>
import functools
import math

import jax
import jax.numpy as jnp
from jax import lax
from jax.experimental import pallas as pl
from jax.experimental.pallas import tpu as pltpu

NEG_SLOPE = 0.1
TAPS = tuple((dy, dx) for dy in (-1, 0, 1) for dx in (-1, 0, 1))


# ---------------------------------------------------------------------------
# In-kernel helpers.
# ---------------------------------------------------------------------------

def _round_up(n, m):
    return ((n + m - 1) // m) * m


def _halo_pad(W):
    return _round_up(W + 1, 128)            # 128-lane aligned interior offset


def _lrelu(v):
    return jnp.where(v > 0, v, NEG_SLOPE * v)


def _col_masks(n, W):
    """Masks for the horizontal taps: valid iff the shifted column stays in [0, W)."""
    col = lax.broadcasted_iota(jnp.int32, (1, n), 1) % W
    return col >= 1, col <= W - 2            # for dx = -1 / dx = +1


def _zero_halo(pad_ref, HW, W, padl):
    """Zero only the (W+1)-wide halo strips of the padded scratch."""
    z = jnp.zeros((pad_ref.shape[0], W + 1), pad_ref.dtype)
    pad_ref[:, padl - (W + 1):padl] = z
    pad_ref[:, padl + HW:padl + HW + W + 1] = z


def _conv3x3_fused(pad_ref, stk_ref, wp_ref, W, padl, HW, m_neg, m_pos):
    """3x3 'same' conv as a single MXU matmul.

    pad_ref : (Cin, HW + 2*padl) bf16 — image at lane offset padl, halos zeroed.
    stk_ref : (9*Cin_pad, HW) bf16 scratch receiving the 9 shifted tap copies.
    wp_ref  : (Cout_blk, 9*Cin_pad) bf16 pre-packed tap weights (zeros in pad cols).
    Returns the f32 (Cout_blk, HW) conv result.
    """
    cin = pad_ref.shape[0]
    cin_pad = stk_ref.shape[0] // 9
    zpad = None
    if cin_pad != cin:
        zpad = jnp.zeros((cin_pad - cin, HW), jnp.bfloat16)
    for t, (dy, dx) in enumerate(TAPS):
        s = dy * W + dx
        v = pad_ref[:, padl + s:padl + s + HW]          # (Cin, HW) bf16, static slice
        if dx == -1:
            v = jnp.where(m_neg, v, jnp.zeros_like(v))
        elif dx == 1:
            v = jnp.where(m_pos, v, jnp.zeros_like(v))
        if zpad is not None:
            v = jnp.concatenate([v, zpad], axis=0)       # keep tap blocks vreg-aligned
        stk_ref[t * cin_pad:(t + 1) * cin_pad, :] = v
    return jnp.dot(wp_ref[...], stk_ref[...], preferred_element_type=jnp.float32)


# ---------------------------------------------------------------------------
# Kernels.
# ---------------------------------------------------------------------------

def _conv3x3_kernel(x_ref, wp_ref, b_ref, o_ref, pad_ref, stk_ref, *, H, W, padl):
    HW = H * W
    m_neg, m_pos = _col_masks(HW, W)
    _zero_halo(pad_ref, HW, W, padl)
    pad_ref[:, padl:padl + HW] = x_ref[0].astype(jnp.bfloat16)
    o_ref[0] = _conv3x3_fused(pad_ref, stk_ref, wp_ref, W, padl, HW, m_neg, m_pos) \
        + b_ref[...]


def _reduce_resblock_kernel(*refs, H, W, padl, n_src, emit_reduced):
    """Fused (1x1 conv over stacked sources) -> ResBlock, one kernel per image."""
    HW = H * W
    xs = refs[:n_src]
    idx = n_src
    wr_ref, w1_ref, b1_ref, w2_ref, b2_ref = refs[idx:idx + 5]
    idx += 5
    o_ref = refs[idx]
    idx += 1
    z_ref = None
    if emit_reduced:
        z_ref = refs[idx]
        idx += 1
    pad_ref, stk_ref = refs[idx], refs[idx + 1]

    m_neg, m_pos = _col_masks(HW, W)
    _zero_halo(pad_ref, HW, W, padl)

    # fused 1x1 channel reduction: stack the sources and do one K = sum(Ci) matmul.
    off = 0
    for k in range(n_src):
        ck = xs[k].shape[1]
        stk_ref[off:off + ck, :] = xs[k][0].astype(jnp.bfloat16)
        off += ck
    z = jnp.dot(wr_ref[...], stk_ref[0:off, :], preferred_element_type=jnp.float32)
    if emit_reduced:
        z_ref[0] = z

    # ResBlock: conv3x3 -> lrelu -> conv3x3 -> lrelu -> (dropout = id, eval) -> + z
    pad_ref[:, padl:padl + HW] = z.astype(jnp.bfloat16)
    h = _lrelu(_conv3x3_fused(pad_ref, stk_ref, w1_ref, W, padl, HW, m_neg, m_pos)
               + b1_ref[...])
    pad_ref[:, padl:padl + HW] = h.astype(jnp.bfloat16)
    h = _lrelu(_conv3x3_fused(pad_ref, stk_ref, w2_ref, W, padl, HW, m_neg, m_pos)
               + b2_ref[...])
    # TODO(synk): nn.Dropout(p=0.5) is identity in eval mode (implemented); training
    # dropout (pltpu.prng_*) is not implemented and would not bit-match torch RNG.
    o_ref[0] = h + z


def _conv1x1_sum_kernel(a_ref, b_ref, w_ref, o_ref):
    s = (a_ref[0] + b_ref[0]).astype(jnp.bfloat16)
    o_ref[0] = jnp.dot(w_ref[...], s, preferred_element_type=jnp.float32)


# ---------------------------------------------------------------------------
# Wrappers (NCHW in / NCHW out; only free reshapes — no transposes or pads).
# ---------------------------------------------------------------------------

def conv3x3_pallas(x, wp, bp):
    """3x3 / stride 1 / pad 1 conv.  wp: (Cout, 9*Cin_pad) bf16, bp: (Cout, 1) f32."""
    B, cin, H, W = x.shape
    cout = wp.shape[0]
    cin_pad = wp.shape[1] // 9
    HW = H * W
    padl = _halo_pad(W)
    ncs = 2 if (cout >= 96 and cout % 2 == 0) else 1   # Cout split -> 2nd parallel axis
    co = cout // ncs
    out = pl.pallas_call(
        functools.partial(_conv3x3_kernel, H=H, W=W, padl=padl),
        out_shape=jax.ShapeDtypeStruct((B, cout, HW), jnp.float32),
        grid=(B, ncs),
        in_specs=[
            pl.BlockSpec((1, cin, HW), lambda i, j: (i, 0, 0)),
            pl.BlockSpec((co, 9 * cin_pad), lambda i, j: (j, 0)),
            pl.BlockSpec((co, 1), lambda i, j: (j, 0)),
        ],
        out_specs=pl.BlockSpec((1, co, HW), lambda i, j: (i, j, 0)),
        scratch_shapes=[pltpu.VMEM((cin, HW + 2 * padl), jnp.bfloat16),
                        pltpu.VMEM((9 * cin_pad, HW), jnp.bfloat16)],
        compiler_params=pltpu.CompilerParams(
            dimension_semantics=("parallel", "parallel")),
    )(x.reshape(B, cin, HW), wp, bp)
    return out.reshape(B, cout, H, W)


def reduce_resblock_pallas(xs, wr, w1, b1, w2, b2, *, emit_reduced=False):
    """Fused (1x1 conv concat(xs)->C, no bias) -> ResBlock.  Sources are passed as
    separate refs (no XLA concat).  Optionally also returns the 1x1 output."""
    B, _, H, W = xs[0].shape
    C = w1.shape[0]
    HW = H * W
    padl = _halo_pad(W)
    n_src = len(xs)
    assert sum(int(x.shape[1]) for x in xs) <= 9 * C

    in_specs = [pl.BlockSpec((1, x.shape[1], HW), lambda i: (i, 0, 0)) for x in xs]
    in_specs += [
        pl.BlockSpec(wr.shape, lambda i: (0, 0)),
        pl.BlockSpec(w1.shape, lambda i: (0, 0)),
        pl.BlockSpec(b1.shape, lambda i: (0, 0)),
        pl.BlockSpec(w2.shape, lambda i: (0, 0)),
        pl.BlockSpec(b2.shape, lambda i: (0, 0)),
    ]
    o_struct = jax.ShapeDtypeStruct((B, C, HW), jnp.float32)
    if emit_reduced:
        out_shape = (o_struct, o_struct)
        out_specs = (pl.BlockSpec((1, C, HW), lambda i: (i, 0, 0)),
                     pl.BlockSpec((1, C, HW), lambda i: (i, 0, 0)))
    else:
        out_shape = o_struct
        out_specs = pl.BlockSpec((1, C, HW), lambda i: (i, 0, 0))

    res = pl.pallas_call(
        functools.partial(_reduce_resblock_kernel, H=H, W=W, padl=padl,
                          n_src=n_src, emit_reduced=emit_reduced),
        out_shape=out_shape,
        grid=(B,),
        in_specs=in_specs,
        out_specs=out_specs,
        scratch_shapes=[pltpu.VMEM((C, HW + 2 * padl), jnp.bfloat16),
                        pltpu.VMEM((9 * C, HW), jnp.bfloat16)],
        compiler_params=pltpu.CompilerParams(dimension_semantics=("parallel",)),
    )(*[x.reshape(B, x.shape[1], HW) for x in xs], wr, w1, b1, w2, b2)

    if emit_reduced:
        out, z = res
        return out.reshape(B, C, H, W), z.reshape(B, C, H, W)
    return res.reshape(B, C, H, W)


def conv1x1_sum_pallas(a, b, wp):
    """1x1 conv of (a + b), no bias; grid tiles (batch, spatial), both parallel."""
    B, cin, H, W = a.shape
    cout = wp.shape[0]
    HW = H * W
    T = 512 if HW % 512 == 0 else (128 if HW % 128 == 0 else HW)
    out = pl.pallas_call(
        _conv1x1_sum_kernel,
        out_shape=jax.ShapeDtypeStruct((B, cout, HW), jnp.float32),
        grid=(B, HW // T),
        in_specs=[
            pl.BlockSpec((1, cin, T), lambda i, j: (i, 0, j)),
            pl.BlockSpec((1, cin, T), lambda i, j: (i, 0, j)),
            pl.BlockSpec((cout, cin), lambda i, j: (0, 0)),
        ],
        out_specs=pl.BlockSpec((1, cout, T), lambda i, j: (i, 0, j)),
        compiler_params=pltpu.CompilerParams(
            dimension_semantics=("parallel", "parallel")),
    )(a.reshape(B, cin, HW), b.reshape(B, cin, HW), wp)
    return out.reshape(B, cout, H, W)


# ---------------------------------------------------------------------------
# One-time parameter packing (hoisted out of the jitted forward).
# ---------------------------------------------------------------------------

def _pack_w3(w):
    """(Cout, Cin, 3, 3) torch layout -> (Cout, 9*Cin_pad) bf16 tap matrix."""
    cout, cin = w.shape[0], w.shape[1]
    cin_pad = _round_up(cin, 16)
    wt = jnp.transpose(w, (0, 2, 3, 1))                  # (Cout, 3, 3, Cin)
    if cin_pad != cin:
        wt = jnp.pad(wt, ((0, 0), (0, 0), (0, 0), (0, cin_pad - cin)))
    return wt.reshape(cout, 9 * cin_pad).astype(jnp.bfloat16)


def _pack_b(b, cout):
    if b is None:
        b = jnp.zeros((cout,), jnp.float32)
    return b.astype(jnp.float32).reshape(cout, 1)


def _pack_w1(w):
    return w.reshape(w.shape[0], w.shape[1]).astype(jnp.bfloat16)


_RRES_PAIRS = (
    ("convdown1", "resb1"), ("convdown2", "resb2"), ("convdown3", "resb3"),
    ("convdown4", "resb4"), ("convdedown4", "resbde4"), ("convdedown3", "resbde3"),
    ("convdedown33", "resbde33"), ("convdedown2", "resbde2"),
    ("convdedown22", "resbde22"),
)
_PS_CONVS = ("upde42", "upde4", "upde34", "upde32", "upde3", "upde28", "upde24",
             "upde22")


def pack_params(raw):
    pp = {}
    w1c, b1c = raw["conv1"]
    pp["conv1_w"], pp["conv1_b"] = _pack_w3(w1c), _pack_b(b1c, w1c.shape[0])
    w_up = jnp.concatenate([raw["up8"], raw["up4"], raw["up2"], raw["up0"]], axis=0)
    pp["up_all_w"], pp["up_all_b"] = _pack_w3(w_up), _pack_b(None, w_up.shape[0])
    for name in _PS_CONVS:
        pp[name + "_w"] = _pack_w3(raw[name])
        pp[name + "_b"] = _pack_b(None, raw[name].shape[0])
    for nred, nres in _RRES_PAIRS:
        pp[nred + "_wr"] = _pack_w1(raw[nred])
        w1, b1, w2, b2 = raw[nres]
        pp[nres + "_w1"], pp[nres + "_b1"] = _pack_w3(w1), _pack_b(b1, w1.shape[0])
        pp[nres + "_w2"], pp[nres + "_b2"] = _pack_w3(w2), _pack_b(b2, w2.shape[0])
    pp["convout_w"] = _pack_w1(raw["convout"])
    for name in ("down1", "down2", "down3"):
        pp[name] = raw[name]
    return pp


# ---------------------------------------------------------------------------
# Ops kept in plain JAX (shared by the Pallas path and the reference).
# ---------------------------------------------------------------------------

def conv_down4x4(x, w):
    # TODO(synk): 4x4 / stride-2 downsampling conv left to XLA; the strided halo
    # gather does not map cleanly onto the fused-spatial BlockSpec tiling.
    return lax.conv_general_dilated(x, w, (2, 2), ((1, 1), (1, 1)),
                                    dimension_numbers=("NCHW", "OIHW", "NCHW"))


def _interp_matrix(n_in, n_out):
    if n_in == 1:
        return jnp.ones((n_out, 1), jnp.float32)
    pos = jnp.arange(n_out, dtype=jnp.float32) * (n_in - 1) / (n_out - 1)
    lo = jnp.clip(jnp.floor(pos).astype(jnp.int32), 0, n_in - 2)
    frac = pos - lo.astype(jnp.float32)
    rows = jnp.arange(n_out)
    m = jnp.zeros((n_out, n_in), jnp.float32)
    m = m.at[rows, lo].set(1.0 - frac)
    m = m.at[rows, lo + 1].add(frac)
    return m


def bilinear_up(x, scale):
    # TODO(synk): bilinear align_corners=True upsampling done as two small XLA matmuls
    # (only applied to the tiny coarse-scale branch).
    B, C, H, W = x.shape
    ah = _interp_matrix(H, H * scale)
    aw = _interp_matrix(W, W * scale)
    return jnp.einsum("oh,bchw,pw->bcop", ah, x, aw)


def pixel_shuffle(x, r):
    # TODO(synk): PixelShuffle is a pure layout op; kept as an XLA reshape/transpose.
    B, C, H, W = x.shape
    c = C // (r * r)
    x = x.reshape(B, c, r, r, H, W)
    x = jnp.transpose(x, (0, 1, 4, 2, 5, 3))
    return x.reshape(B, c, H * r, W * r)


# ---------------------------------------------------------------------------
# Pure-XLA reference implementations of the Pallas ops (correctness check).
# ---------------------------------------------------------------------------

def _conv3x3_ref(x, w, b=None):
    y = lax.conv_general_dilated(x, w, (1, 1), ((1, 1), (1, 1)),
                                 dimension_numbers=("NCHW", "OIHW", "NCHW"))
    return y if b is None else y + b.reshape(1, -1, 1, 1)


def _conv1x1_ref(x, w):
    return lax.conv_general_dilated(x, w, (1, 1), ((0, 0), (0, 0)),
                                    dimension_numbers=("NCHW", "OIHW", "NCHW"))


def _rres_ref(raw, nred, nres, xs, emit_reduced=False):
    z = _conv1x1_ref(jnp.concatenate(xs, axis=1), raw[nred])
    w1, b1, w2, b2 = raw[nres]
    h = _lrelu(_conv3x3_ref(z, w1, b1))
    h = _lrelu(_conv3x3_ref(h, w2, b2))
    out = h + z
    return (out, z) if emit_reduced else out


# ---------------------------------------------------------------------------
# allnet forward — one graph structure, switchable op implementations.
# ---------------------------------------------------------------------------

class _PallasOps:
    def __init__(self, pp):
        self.pp = pp

    def up_all(self, x):
        return conv3x3_pallas(x, self.pp["up_all_w"], self.pp["up_all_b"])

    def conv3(self, name, x):
        return conv3x3_pallas(x, self.pp[name + "_w"], self.pp[name + "_b"])

    def rres(self, nred, nres, xs, emit_reduced=False):
        return reduce_resblock_pallas(
            xs, self.pp[nred + "_wr"],
            self.pp[nres + "_w1"], self.pp[nres + "_b1"],
            self.pp[nres + "_w2"], self.pp[nres + "_b2"],
            emit_reduced=emit_reduced)

    def down(self, name, x):
        return conv_down4x4(x, self.pp[name])

    def conv_out(self, a, b):
        return conv1x1_sum_pallas(a, b, self.pp["convout_w"])


class _RefOps:
    def __init__(self, raw):
        self.raw = raw

    def up_all(self, x):
        w = jnp.concatenate([self.raw["up8"], self.raw["up4"],
                             self.raw["up2"], self.raw["up0"]], axis=0)
        return _conv3x3_ref(x, w)

    def conv3(self, name, x):
        p = self.raw[name]
        if isinstance(p, tuple):
            return _conv3x3_ref(x, p[0], p[1])
        return _conv3x3_ref(x, p)

    def rres(self, nred, nres, xs, emit_reduced=False):
        return _rres_ref(self.raw, nred, nres, xs, emit_reduced)

    def down(self, name, x):
        return conv_down4x4(x, self.raw[name])

    def conv_out(self, a, b):
        return _conv1x1_ref(a + b, self.raw["convout"])


def _forward(ops, x, y):
    xu = ops.up_all(x)                                   # up8 | up4 | up2 | up0
    D = xu.shape[1] // 4
    xu8 = bilinear_up(xu[:, 0 * D:1 * D], 8)
    xu4 = bilinear_up(xu[:, 1 * D:2 * D], 4)
    xu2 = bilinear_up(xu[:, 2 * D:3 * D], 2)
    xu0 = xu[:, 3 * D:4 * D]
    y0 = ops.conv3("conv1", y)

    en0, enres = ops.rres("convdown1", "resb1", [xu8, y0], emit_reduced=True)
    en1 = ops.down("down1", en0)
    en1 = ops.rres("convdown2", "resb2", [xu4, en1])
    en2 = ops.down("down2", en1)
    en2 = ops.rres("convdown3", "resb3", [xu2, en2])
    en3 = ops.down("down3", en2)
    en3 = ops.rres("convdown4", "resb4", [xu0, en3])

    upde43 = pixel_shuffle(ops.conv3("upde42", en3), 2)
    de3 = ops.rres("convdedown4", "resbde4", [en2, upde43])
    de3 = pixel_shuffle(ops.conv3("upde4", de3), 2)

    upde34 = pixel_shuffle(ops.conv3("upde34", upde43), 2)
    upde32 = pixel_shuffle(ops.conv3("upde32", en2), 2)
    de2 = ops.rres("convdedown3", "resbde3", [upde32, upde34])
    de2 = ops.rres("convdedown33", "resbde33", [de2, de3])
    de2 = pixel_shuffle(ops.conv3("upde3", de2), 2)

    upde28 = pixel_shuffle(ops.conv3("upde28", upde34), 2)
    upde24 = pixel_shuffle(ops.conv3("upde24", upde32), 2)
    upde22 = pixel_shuffle(ops.conv3("upde22", en1), 2)
    de1 = ops.rres("convdedown2", "resbde2", [upde22, upde24, upde28])
    de1 = ops.rres("convdedown22", "resbde22", [de1, de2])

    out = ops.conv_out(enres, de1)
    return out, out, out


def allnet_pallas(pp, x, y):
    return _forward(_PallasOps(pp), x, y)


def allnet_ref(raw, x, y):
    return _forward(_RefOps(raw), x, y)


# ---------------------------------------------------------------------------
# Parameter construction (PyTorch-Conv2d-style uniform init; eval mode).
# ---------------------------------------------------------------------------

def init_params(key):
    keys = iter(jax.random.split(key, 64))

    def conv(cout, cin, k, bias=False):
        kw, kb = jax.random.split(next(keys))
        bound = 1.0 / math.sqrt(cin * k * k)
        w = jax.random.uniform(kw, (cout, cin, k, k), jnp.float32, -bound, bound)
        if not bias:
            return w
        b = jax.random.uniform(kb, (cout,), jnp.float32, -bound, bound)
        return w, b

    def resblock(c):
        w1, b1 = conv(c, c, 3, bias=True)
        w2, b2 = conv(c, c, 3, bias=True)
        return (w1, b1, w2, b2)

    D, IN = 48, 31
    return {
        "conv1": conv(D, 3, 3, bias=True),
        "up8": conv(D, IN, 3), "up4": conv(D, IN, 3),
        "up2": conv(D, IN, 3), "up0": conv(D, IN, 3),
        "convdown1": conv(D, 2 * D, 1), "resb1": resblock(D), "down1": conv(D, D, 4),
        "convdown2": conv(D, 2 * D, 1), "resb2": resblock(D), "down2": conv(D, D, 4),
        "convdown3": conv(D, 2 * D, 1), "resb3": resblock(D), "down3": conv(D, D, 4),
        "convdown4": conv(D, 2 * D, 1), "resb4": resblock(D),
        "upde42": conv(4 * D, D, 3), "convdedown4": conv(D, 2 * D, 1),
        "resbde4": resblock(D),
        "upde4": conv(4 * D, D, 3), "upde34": conv(4 * D, D, 3),
        "upde32": conv(4 * D, D, 3),
        "convdedown3": conv(D, 2 * D, 1), "resbde3": resblock(D),
        "convdedown33": conv(D, 2 * D, 1), "resbde33": resblock(D),
        "upde3": conv(4 * D, D, 3), "upde28": conv(4 * D, D, 3),
        "upde24": conv(4 * D, D, 3), "upde22": conv(4 * D, D, 3),
        "convdedown2": conv(D, 3 * D, 1), "resbde2": resblock(D),
        "convdedown22": conv(D, 2 * D, 1), "resbde22": resblock(D),
        "convout": conv(IN, D, 1),
    }


if __name__ == "__main__":
    root = jax.random.PRNGKey(0)
    kp, kx, ky, ka, kb = jax.random.split(root, 5)
    raw = init_params(kp)
    packed = pack_params(raw)                     # one-time weight pre-pack (not jitted)

    B, H0, W0 = 2, 4, 4                           # y (RGB guide) is 8x the size of x
    x = jax.random.normal(kx, (B, 31, H0, W0), jnp.float32)
    y = jax.random.normal(ky, (B, 3, 8 * H0, 8 * W0), jnp.float32)

    # --- unit check 1: single-matmul 3x3 conv (with Cout split) vs lax.conv ---
    xt = jax.random.normal(ka, (2, 48, 16, 16), jnp.float32)
    got = jax.block_until_ready(conv3x3_pallas(xt, packed["upde3_w"], packed["upde3_b"]))
    want = _conv3x3_ref(xt, raw["upde3"])
    rel = jnp.linalg.norm(got - want) / (jnp.linalg.norm(want) + 1e-12)
    assert got.shape == want.shape and float(rel) < 3e-2, float(rel)

    # --- unit check 2: fused multi-source 1x1 + ResBlock kernel vs lax.conv ref ---
    xs = [jax.random.normal(jax.random.fold_in(kb, i), (2, 48, 16, 16), jnp.float32)
          for i in range(2)]
    gout, gz = reduce_resblock_pallas(
        xs, packed["convdown1_wr"], packed["resb1_w1"], packed["resb1_b1"],
        packed["resb1_w2"], packed["resb1_b2"], emit_reduced=True)
    gout = jax.block_until_ready(gout)
    wout, wz = _rres_ref(raw, "convdown1", "resb1", xs, emit_reduced=True)
    rel1 = jnp.linalg.norm(gout - wout) / (jnp.linalg.norm(wout) + 1e-12)
    rel2 = jnp.linalg.norm(gz - wz) / (jnp.linalg.norm(wz) + 1e-12)
    assert float(rel1) < 3e-2 and float(rel2) < 3e-2, (float(rel1), float(rel2))

    # --- full allnet forward: Pallas kernels vs pure-XLA reference ---
    run = jax.jit(allnet_pallas)
    out = jax.block_until_ready(run(packed, x, y)[0])
    ref = jax.jit(allnet_ref)(raw, x, y)[0]
    assert out.shape == (B, 31, 8 * H0, 8 * W0) and out.dtype == jnp.float32
    rel = jnp.linalg.norm(out - ref) / (jnp.linalg.norm(ref) + 1e-12)
    assert float(rel) < 5e-2, float(rel)
    print("KERNEL_OK")
</pallas_src>

<mosaic_0001>
module attributes {stable_mosaic.version = 11 : i64} {
  func.func @_conv3x3_kernel(%arg0: i32, %arg1: i32, %arg2: memref<1x48x256xf32, #tpu.memory_space<vmem>>, %arg3: memref<96x432xbf16, #tpu.memory_space<vmem>>, %arg4: memref<96x1xf32, #tpu.memory_space<vmem>>, %arg5: memref<1x96x256xf32, #tpu.memory_space<vmem>>, %arg6: memref<48x512xbf16, #tpu.memory_space<vmem>>, %arg7: memref<432x256xbf16, #tpu.memory_space<vmem>>) attributes {dimension_semantics = [#tpu.dimension_semantics<parallel>, #tpu.dimension_semantics<parallel>], iteration_bounds = array<i64: 2, 2>, scalar_prefetch = 0 : i64, scratch_operands = 2 : i64, tpu.core_type = #tpu.core_type<tc>, window_params = [{transform_indices = @transform_0, window_bounds = array<i64: 1, 48, 256>}, {transform_indices = @transform_1, window_bounds = array<i64: 96, 432>}, {transform_indices = @transform_2, window_bounds = array<i64: 96, 1>}, {transform_indices = @transform_3, window_bounds = array<i64: 1, 96, 256>}]} {
    %0 = tpu.iota {dimensions = array<i32: 1>} : vector<1x256xi32>
    %c16_i32 = arith.constant 16 : i32
    %c0_i32 = arith.constant 0 : i32
    %1 = arith.cmpi eq, %c16_i32, %c0_i32 : i32
    %c1_i32 = arith.constant 1 : i32
    %2 = arith.select %1, %c1_i32, %c16_i32 : i32
    %3 = vector.broadcast %2 : i32 to vector<1x256xi32>
    %4 = arith.remsi %0, %3 : vector<1x256xi32>
    %c0_i32_0 = arith.constant 0 : i32
    %5 = vector.broadcast %c0_i32_0 : i32 to vector<1x256xi32>
    %6 = arith.cmpi ne, %4, %5 : vector<1x256xi32>
    %c0_i32_1 = arith.constant 0 : i32
    %7 = vector.broadcast %c0_i32_1 : i32 to vector<1x256xi32>
    %8 = arith.cmpi slt, %4, %7 : vector<1x256xi32>
    %c0_i32_2 = arith.constant 0 : i32
    %9 = arith.cmpi slt, %2, %c0_i32_2 : i32
    %10 = vector.broadcast %9 : i1 to vector<1x256xi1>
    %11 = vector.broadcast %10 : vector<1x256xi1> to vector<1x256xi1>
    %12 = arith.xori %8, %11 : vector<1x256xi1>
    %13 = arith.andi %12, %6 : vector<1x256xi1>
    %14 = vector.broadcast %2 : i32 to vector<1x256xi32>
    %15 = arith.addi %4, %14 : vector<1x256xi32>
    %16 = arith.select %13, %15, %4 : vector<1x256xi1>, vector<1x256xi32>
    %c1_i32_3 = arith.constant 1 : i32
    %17 = vector.broadcast %c1_i32_3 : i32 to vector<1x256xi32>
    %18 = arith.cmpi sge, %16, %17 : vector<1x256xi32>
    %c14_i32 = arith.constant 14 : i32
    %19 = vector.broadcast %c14_i32 : i32 to vector<1x256xi32>
    %20 = arith.cmpi sle, %16, %19 : vector<1x256xi32>
    %cst = arith.constant 0.000000e+00 : bf16
    %21 = vector.broadcast %cst : bf16 to vector<48x17xbf16>
    %c0 = arith.constant 0 : index
    %c111 = arith.constant 111 : index
    %22 = vector.load %arg6[%c0, %c111] : memref<48x512xbf16, #tpu.memory_space<vmem>>, vector<48x17xbf16>
    tpu.vector_store %arg6[%c0, %c111], %21 {strides = array<i32>} : memref<48x512xbf16, #tpu.memory_space<vmem>>, vector<48x17xbf16>,
    %c0_4 = arith.constant 0 : index
    %c384 = arith.constant 384 : index
    %23 = vector.load %arg6[%c0_4, %c384] : memref<48x512xbf16, #tpu.memory_space<vmem>>, vector<48x17xbf16>
    tpu.vector_store %arg6[%c0_4, %c384], %21 {strides = array<i32>} : memref<48x512xbf16, #tpu.memory_space<vmem>>, vector<48x17xbf16>,
    %c0_5 = arith.constant 0 : index
    %c0_6 = arith.constant 0 : index
    %c0_7 = arith.constant 0 : index
    %24 = vector.load %arg2[%c0_5, %c0_6, %c0_7] : memref<1x48x256xf32, #tpu.memory_space<vmem>>, vector<1x48x256xf32>
    %25 = vector.shape_cast %24 : vector<1x48x256xf32> to vector<48x256xf32>
    %26 = arith.truncf %25 : vector<48x256xf32> to vector<48x256xbf16>
    %c0_8 = arith.constant 0 : index
    %c128 = arith.constant 128 : index
    %27 = vector.load %arg6[%c0_8, %c128] : memref<48x512xbf16, #tpu.memory_space<vmem>>, vector<48x256xbf16>
    tpu.vector_store %arg6[%c0_8, %c128], %26 {strides = array<i32>} : memref<48x512xbf16, #tpu.memory_space<vmem>>, vector<48x256xbf16>,
    %c0_9 = arith.constant 0 : index
    %c111_10 = arith.constant 111 : index
    %28 = vector.load %arg6[%c0_9, %c111_10] : memref<48x512xbf16, #tpu.memory_space<vmem>>, vector<48x256xbf16>
    %cst_11 = arith.constant 0.000000e+00 : bf16
    %29 = vector.broadcast %cst_11 : bf16 to vector<48x256xbf16>
    %30 = vector.shape_cast %18 : vector<1x256xi1> to vector<1x256xi1>
    %31 = vector.broadcast %30 : vector<1x256xi1> to vector<48x256xi1>
    %32 = arith.select %31, %28, %29 : vector<48x256xi1>, vector<48x256xbf16>
    %c0_12 = arith.constant 0 : index
    %c0_13 = arith.constant 0 : index
    %33 = vector.load %arg7[%c0_12, %c0_13] : memref<432x256xbf16, #tpu.memory_space<vmem>>, vector<48x256xbf16>
    tpu.vector_store %arg7[%c0_12, %c0_13], %32 {strides = array<i32>} : memref<432x256xbf16, #tpu.memory_space<vmem>>, vector<48x256xbf16>,
    %c0_14 = arith.constant 0 : index
    %c112 = arith.constant 112 : index
    %34 = vector.load %arg6[%c0_14, %c112] : memref<48x512xbf16, #tpu.memory_space<vmem>>, vector<48x256xbf16>
    %c48 = arith.constant 48 : index
    %c0_15 = arith.constant 0 : index
    %35 = vector.load %arg7[%c48, %c0_15] : memref<432x256xbf16, #tpu.memory_space<vmem>>, vector<48x256xbf16>
    tpu.vector_store %arg7[%c48, %c0_15], %34 {strides = array<i32>} : memref<432x256xbf16, #tpu.memory_space<vmem>>, vector<48x256xbf16>,
    %c0_16 = arith.constant 0 : index
    %c113 = arith.constant 113 : index
    %36 = vector.load %arg6[%c0_16, %c113] : memref<48x512xbf16, #tpu.memory_space<vmem>>, vector<48x256xbf16>
    %cst_17 = arith.constant 0.000000e+00 : bf16
    %37 = vector.broadcast %cst_17 : bf16 to vector<48x256xbf16>
    %38 = vector.shape_cast %20 : vector<1x256xi1> to vector<1x256xi1>
    %39 = vector.broadcast %38 : vector<1x256xi1> to vector<48x256xi1>
    %40 = arith.select %39, %36, %37 : vector<48x256xi1>, vector<48x256xbf16>
    %c96 = arith.constant 96 : index
    %c0_18 = arith.constant 0 : index
    %41 = vector.load %arg7[%c96, %c0_18] : memref<432x256xbf16, #tpu.memory_space<vmem>>, vector<48x256xbf16>
    tpu.vector_store %arg7[%c96, %c0_18], %40 {strides = array<i32>} : memref<432x256xbf16, #tpu.memory_space<vmem>>, vector<48x256xbf16>,
    %c0_19 = arith.constant 0 : index
    %c127 = arith.constant 127 : index
    %42 = vector.load %arg6[%c0_19, %c127] : memref<48x512xbf16, #tpu.memory_space<vmem>>, vector<48x256xbf16>
    %cst_20 = arith.constant 0.000000e+00 : bf16
    %43 = vector.broadcast %cst_20 : bf16 to vector<48x256xbf16>
    %44 = vector.shape_cast %18 : vector<1x256xi1> to vector<1x256xi1>
    %45 = vector.broadcast %44 : vector<1x256xi1> to vector<48x256xi1>
    %46 = arith.select %45, %42, %43 : vector<48x256xi1>, vector<48x256xbf16>
    %c144 = arith.constant 144 : index
    %c0_21 = arith.constant 0 : index
    %47 = vector.load %arg7[%c144, %c0_21] : memref<432x256xbf16, #tpu.memory_space<vmem>>, vector<48x256xbf16>
    tpu.vector_store %arg7[%c144, %c0_21], %46 {strides = array<i32>} : memref<432x256xbf16, #tpu.memory_space<vmem>>, vector<48x256xbf16>,
    %c0_22 = arith.constant 0 : index
    %c128_23 = arith.constant 128 : index
    %48 = vector.load %arg6[%c0_22, %c128_23] : memref<48x512xbf16, #tpu.memory_space<vmem>>, vector<48x256xbf16>
    %c192 = arith.constant 192 : index
    %c0_24 = arith.constant 0 : index
    %49 = vector.load %arg7[%c192, %c0_24] : memref<432x256xbf16, #tpu.memory_space<vmem>>, vector<48x256xbf16>
    tpu.vector_store %arg7[%c192, %c0_24], %48 {strides = array<i32>} : memref<432x256xbf16, #tpu.memory_space<vmem>>, vector<48x256xbf16>,
    %c0_25 = arith.constant 0 : index
    %c129 = arith.constant 129 : index
    %50 = vector.load %arg6[%c0_25, %c129] : memref<48x512xbf16, #tpu.memory_space<vmem>>, vector<48x256xbf16>
    %cst_26 = arith.constant 0.000000e+00 : bf16
    %51 = vector.broadcast %cst_26 : bf16 to vector<48x256xbf16>
    %52 = vector.shape_cast %20 : vector<1x256xi1> to vector<1x256xi1>
    %53 = vector.broadcast %52 : vector<1x256xi1> to vector<48x256xi1>
    %54 = arith.select %53, %50, %51 : vector<48x256xi1>, vector<48x256xbf16>
    %c240 = arith.constant 240 : index
    %c0_27 = arith.constant 0 : index
    %55 = vector.load %arg7[%c240, %c0_27] : memref<432x256xbf16, #tpu.memory_space<vmem>>, vector<48x256xbf16>
    tpu.vector_store %arg7[%c240, %c0_27], %54 {strides = array<i32>} : memref<432x256xbf16, #tpu.memory_space<vmem>>, vector<48x256xbf16>,
    %c0_28 = arith.constant 0 : index
    %c143 = arith.constant 143 : index
    %56 = vector.load %arg6[%c0_28, %c143] : memref<48x512xbf16, #tpu.memory_space<vmem>>, vector<48x256xbf16>
    %cst_29 = arith.constant 0.000000e+00 : bf16
    %57 = vector.broadcast %cst_29 : bf16 to vector<48x256xbf16>
    %58 = vector.shape_cast %18 : vector<1x256xi1> to vector<1x256xi1>
    %59 = vector.broadcast %58 : vector<1x256xi1> to vector<48x256xi1>
    %60 = arith.select %59, %56, %57 : vector<48x256xi1>, vector<48x256xbf16>
    %c288 = arith.constant 288 : index
    %c0_30 = arith.constant 0 : index
    %61 = vector.load %arg7[%c288, %c0_30] : memref<432x256xbf16, #tpu.memory_space<vmem>>, vector<48x256xbf16>
    tpu.vector_store %arg7[%c288, %c0_30], %60 {strides = array<i32>} : memref<432x256xbf16, #tpu.memory_space<vmem>>, vector<48x256xbf16>,
    %c0_31 = arith.constant 0 : index
    %c144_32 = arith.constant 144 : index
    %62 = vector.load %arg6[%c0_31, %c144_32] : memref<48x512xbf16, #tpu.memory_space<vmem>>, vector<48x256xbf16>
    %c336 = arith.constant 336 : index
    %c0_33 = arith.constant 0 : index
    %63 = vector.load %arg7[%c336, %c0_33] : memref<432x256xbf16, #tpu.memory_space<vmem>>, vector<48x256xbf16>
    tpu.vector_store %arg7[%c336, %c0_33], %62 {strides = array<i32>} : memref<432x256xbf16, #tpu.memory_space<vmem>>, vector<48x256xbf16>,
    %c0_34 = arith.constant 0 : index
    %c145 = arith.constant 145 : index
    %64 = vector.load %arg6[%c0_34, %c145] : memref<48x512xbf16, #tpu.memory_space<vmem>>, vector<48x256xbf16>
    %cst_35 = arith.constant 0.000000e+00 : bf16
    %65 = vector.broadcast %cst_35 : bf16 to vector<48x256xbf16>
    %66 = vector.shape_cast %20 : vector<1x256xi1> to vector<1x256xi1>
    %67 = vector.broadcast %66 : vector<1x256xi1> to vector<48x256xi1>
    %68 = arith.select %67, %64, %65 : vector<48x256xi1>, vector<48x256xbf16>
    %c384_36 = arith.constant 384 : index
    %c0_37 = arith.constant 0 : index
    %69 = vector.load %arg7[%c384_36, %c0_37] : memref<432x256xbf16, #tpu.memory_space<vmem>>, vector<48x256xbf16>
    tpu.vector_store %arg7[%c384_36, %c0_37], %68 {strides = array<i32>} : memref<432x256xbf16, #tpu.memory_space<vmem>>, vector<48x256xbf16>,
    %c0_38 = arith.constant 0 : index
    %c0_39 = arith.constant 0 : index
    %70 = vector.load %arg3[%c0_38, %c0_39] : memref<96x432xbf16, #tpu.memory_space<vmem>>, vector<96x432xbf16>
    %c0_40 = arith.constant 0 : index
    %c0_41 = arith.constant 0 : index
    %71 = vector.load %arg7[%c0_40, %c0_41] : memref<432x256xbf16, #tpu.memory_space<vmem>>, vector<432x256xbf16>
    %cst_42 = arith.constant dense<0.000000e+00> : vector<96x256xf32>
    %72 = tpu.matmul %70, %71, %cst_42 {dimension_numbers = #tpu.dot_dimension_numbers<[1], [0], [0], [1], [0, 0, 1, 1], [], []>} : vector<96x432xbf16>, vector<432x256xbf16>, vector<96x256xf32> -> vector<96x256xf32>
    %c0_43 = arith.constant 0 : index
    %c0_44 = arith.constant 0 : index
    %73 = vector.load %arg4[%c0_43, %c0_44] : memref<96x1xf32, #tpu.memory_space<vmem>>, vector<96x1xf32>
    %74 = vector.broadcast %73 : vector<96x1xf32> to vector<96x256xf32>
    %75 = arith.addf %72, %74 : vector<96x256xf32>
    %c0_45 = arith.constant 0 : index
    %c0_46 = arith.constant 0 : index
    %c0_47 = arith.constant 0 : index
    %76 = vector.load %arg5[%c0_45, %c0_46, %c0_47] : memref<1x96x256xf32, #tpu.memory_space<vmem>>, vector<1x96x256xf32>
    %77 = vector.shape_cast %76 : vector<1x96x256xf32> to vector<96x256xf32>
    %78 = vector.shape_cast %75 : vector<96x256xf32> to vector<1x96x256xf32>
    tpu.vector_store %arg5[%c0_45, %c0_46, %c0_47], %78 {strides = array<i32>} : memref<1x96x256xf32, #tpu.memory_space<vmem>>, vector<1x96x256xf32>,
    return
  }
  func.func @transform_0(%arg0: i32, %arg1: i32) -> (i32, i32, i32) {
    %c0_i32 = arith.constant 0 : i32
    %c0_i32_0 = arith.constant 0 : i32
    %c0_i32_1 = arith.constant 0 : i32
    return %arg0, %c0_i32, %c0_i32_0 : i32, i32, i32
  }
  func.func @transform_1(%arg0: i32, %arg1: i32) -> (i32, i32) {
    %c0_i32 = arith.constant 0 : i32
    %c0_i32_0 = arith.constant 0 : i32
    return %arg1, %c0_i32 : i32, i32
  }
  func.func @transform_2(%arg0: i32, %arg1: i32) -> (i32, i32) {
    %c0_i32 = arith.constant 0 : i32
    %c0_i32_0 = arith.constant 0 : i32
    return %arg1, %c0_i32 : i32, i32
  }
  func.func @transform_3(%arg0: i32, %arg1: i32) -> (i32, i32, i32) {
    %c0_i32 = arith.constant 0 : i32
    %c0_i32_0 = arith.constant 0 : i32
    return %arg0, %arg1, %c0_i32 : i32, i32, i32
  }
}

</mosaic_0001>

<llo_original>
// kernel: tpu_custom_call.1
$region0: #{tpu_custom_call.1}
  #allocation0 [shape = 'u32[]', space=smem, size = 0x4, offset = 0x4, fixed_abs, tag = 'smem constant byte address 0x4 - core index']
  #allocation1 [shape = 'u32[144,128]{1,0:T(1,128)}', space=vmem, size = 0x12000, scoped, tag = 'internal scratch']
  #allocation2 [shape = 'bf16[48,512]{1,0:T(8,128)(2,1)}', space=vmem, size = 0xc000, scoped, tag = 'scratch operand']
  #allocation3 [shape = 'bf16[432,256]{1,0:T(8,128)(2,1)}', space=vmem, size = 0x36000, scoped, tag = 'scratch operand']
  %s0 = inlined_call_operand.vmem [shape: f32[2,48,256], index: 0, kind: input, shape index: {}]
  %s1 = inlined_call_operand.hbm [shape: bf16[192,432], index: 1, kind: input, shape index: {}]
  %s2 = inlined_call_operand.vmem [shape: f32[192,1], index: 2, kind: input, shape index: {}]
  %s3 = inlined_call_operand.hbm [shape: f32[2,192,256], index: 3, kind: output, shape index: {}]
  %s4 = sld [smem:[#allocation0]]
  $region49: #{tpu_custom_call.1} parent=0
    _
  %s6 = ssub.s32 1, %s4
  %s7 = scalar_select 0, %s6, %s4
  $region1: #{tpu_custom_call.1} parent=0
    #allocation4 [shape = 'u8[196608]{0}', space=vmem, size = 0x30000, scoped, tag = 'input window, operand 1']
    #allocation5 [shape = 's32[2]{0}', space=sflag, size = 0x8, scoped, tag = 'scoped memory for tpu_custom_call.1']
    #allocation6 [shape = 's32[2]{0}', space=sflag, size = 0x8, scoped, tag = 'scoped memory for tpu_custom_call.1']
    #allocation7 [shape = 'u8[196608]{0}', space=vmem, size = 0x30000, scoped, tag = 'output window, operand 0']
    %8 = vsyncpa [#allocation5], 0
    %s9 = scalar_lea.sflag [#allocation5], 1
    %10 = vsyncpa %s9, 0
    %11 = vsyncpa [#allocation6], 0
    %s12 = scalar_lea.sflag [#allocation6], 1
    %13 = vsyncpa %s12, 0
    loop: start=0, step=1, limit=6
    $region2: #{tpu_custom_call.1} parent=1 // loop_pre_header
      _
    $region3: #{tpu_custom_call.1} parent=1 // loop_header
      %s15 = sphi 0, %s19
      %p16 = scmp.ge.s32.totalorder %s15, 6
      %s22 = sphi 0, %s34
      %s23 = sphi 0, %s30
      %s24 = sphi 0, %s22
      %s25 = sphi 0, %s23
      %s26 = sphi 0, %s24
      %s27 = sphi 0, %s25
      %s37 = sphi 0, %s39
      %s40 = sphi 0, %s37
      %s41 = sphi 0, %s40
      %s57 = sphi 0, %s41
      %s63 = sphi 0, %s65
      %s66 = sphi 0, %s63
      %s67 = sphi 0, %s66
      %s83 = sphi 0, %s67
      %s89 = sphi 0, %s91
      %s92 = sphi 0, %s89
      %s93 = sphi 0, %s92
      %s109 = sphi 0, %s93
      %s117 = sphi 0, %s119
      %s120 = sphi 0, %s117
      %s121 = sphi 0, %s120
      %s137 = sphi 0, %s121
    $region4: #{tpu_custom_call.1} parent=1 // loop_header_branch
      %18 = sbr.rel (%p16) target = $region8
    $region5: #{tpu_custom_call.1} parent=1 // loop_body
      %s20 = ssub.s32 %s15, 1
      %s21 = ssub.s32 %s15, 2
      %s28 = sadd.s32 1, %s23
      %p29 = scmp.ge.s32.totalorder %s28, 2
      %s30 = scalar_select %p29, 0, %s28
      %s31 = sadd.s32 1, %s22
      %s32 = scalar_select %p29, %s31, %s22
      %p33 = scmp.ge.s32.totalorder %s32, 2
      %s34 = scalar_select %p33, 0, %s32
      %s35 = ssub.s32 %s22, %s34
      %p36 = scmp.eq.s32.totalorder %s35, 0
      %s38 = sadd.s32 %s37, 1
      %s39 = scalar_select %p36, %s37, %s38
      %p42 = pneg %p36
      %p43 = scmp.eq.s32.totalorder %s15, 3
      %p44 = por %p42, %p43
      %p45 = scmp.ne.s32.totalorder %s37, %s40
      %p46 = scmp.eq.s32.totalorder %s15, 0
      %p47 = por %p45, %p46
      %p48 = scmp.ne.s32.totalorder %s37, %s40
      %p49 = scmp.eq.s32.totalorder %s20, 3
      %p50 = por %p48, %p49
      %p51 = scmp.ne.s32.totalorder %s40, %s41
      %p52 = scmp.eq.s32.totalorder %s20, 0
      %p53 = por %p51, %p52
      %p54 = scmp.ne.s32.totalorder %s40, %s41
      %p55 = scmp.eq.s32.totalorder %s21, 3
      %p56 = por %p54, %p55
      %p58 = scmp.ne.s32.totalorder %s41, %s57
      %p59 = scmp.eq.s32.totalorder %s21, 0
      %p60 = por %p58, %p59
      %s61 = ssub.s32 %s23, %s30
      %p62 = scmp.eq.s32.totalorder %s61, 0
      %s64 = sadd.s32 %s63, 1
      %s65 = scalar_select %p62, %s63, %s64
      %p68 = pneg %p62
      %p69 = scmp.eq.s32.totalorder %s15, 3
      %p70 = por %p68, %p69
      %p71 = scmp.ne.s32.totalorder %s63, %s66
      %p72 = scmp.eq.s32.totalorder %s15, 0
      %p73 = por %p71, %p72
      %p74 = scmp.ne.s32.totalorder %s63, %s66
      %p75 = scmp.eq.s32.totalorder %s20, 3
      %p76 = por %p74, %p75
      %p77 = scmp.ne.s32.totalorder %s66, %s67
      %p78 = scmp.eq.s32.totalorder %s20, 0
      %p79 = por %p77, %p78
      %p80 = scmp.ne.s32.totalorder %s66, %s67
      %p81 = scmp.eq.s32.totalorder %s21, 3
      %p82 = por %p80, %p81
      %p84 = scmp.ne.s32.totalorder %s67, %s83
      %p85 = scmp.eq.s32.totalorder %s21, 0
      %p86 = por %p84, %p85
      %s87 = ssub.s32 %s23, %s30
      %p88 = scmp.eq.s32.totalorder %s87, 0
      %s90 = sadd.s32 %s89, 1
      %s91 = scalar_select %p88, %s89, %s90
      %p94 = pneg %p88
      %p95 = scmp.eq.s32.totalorder %s15, 3
      %p96 = por %p94, %p95
      %p97 = scmp.ne.s32.totalorder %s89, %s92
      %p98 = scmp.eq.s32.totalorder %s15, 0
      %p99 = por %p97, %p98
      %p100 = scmp.ne.s32.totalorder %s89, %s92
      %p101 = scmp.eq.s32.totalorder %s20, 3
      %p102 = por %p100, %p101
      %p103 = scmp.ne.s32.totalorder %s92, %s93
      %p104 = scmp.eq.s32.totalorder %s20, 0
      %p105 = por %p103, %p104
      %p106 = scmp.ne.s32.totalorder %s92, %s93
      %p107 = scmp.eq.s32.totalorder %s21, 3
      %p108 = por %p106, %p107
      %p110 = scmp.ne.s32.totalorder %s93, %s109
      %p111 = scmp.eq.s32.totalorder %s21, 0
      %p112 = por %p110, %p111
      %s113 = ssub.s32 %s22, %s34
      %s114 = ssub.s32 %s23, %s30
      %s115 = sor.u32 %s113, %s114
      %p116 = scmp.eq.s32.totalorder %s115, 0
      %s118 = sadd.s32 %s117, 1
      %s119 = scalar_select %p116, %s117, %s118
      %p122 = pneg %p116
      %p123 = scmp.eq.s32.totalorder %s15, 3
      %p124 = por %p122, %p123
      %p125 = scmp.ne.s32.totalorder %s117, %s120
      %p126 = scmp.eq.s32.totalorder %s15, 0
      %p127 = por %p125, %p126
      %p128 = scmp.ne.s32.totalorder %s117, %s120
      %p129 = scmp.eq.s32.totalorder %s20, 3
      %p130 = por %p128, %p129
      %p131 = scmp.ne.s32.totalorder %s120, %s121
      %p132 = scmp.eq.s32.totalorder %s20, 0
      %p133 = por %p131, %p132
      %p134 = scmp.ne.s32.totalorder %s120, %s121
      %p135 = scmp.eq.s32.totalorder %s21, 3
      %p136 = por %p134, %p135
      %p138 = scmp.ne.s32.totalorder %s121, %s137
      %p139 = scmp.eq.s32.totalorder %s21, 0
      %p140 = por %p138, %p139
      %p141 = scmp.le.s32.totalorder 1, %s15
      %p142 = scmp.lt.s32.totalorder %s15, 5
      %p143 = pnand %p141, %p142
      %p144 = pneg %p143
      // Predicated region
      $region9: #{tpu_custom_call.1} parent=5 // pred_check
        _
      $region10: #{tpu_custom_call.1} parent=5 // pred_check_branch
        %146 = sbr.rel (%p143) target = $region12
      $region11: #{tpu_custom_call.1} parent=5 // pred_region
        %s147 = ssub.s32 %s15, 1
      $region12: #{tpu_custom_call.1} parent=5 // pred_fallthru
        _
      %p148 = scmp.lt.s32.totalorder %s15, 4
      // Predicated region
      $region13: #{tpu_custom_call.1} parent=5 // pred_check
        %p149 = pneg %p148
      $region14: #{tpu_custom_call.1} parent=5 // pred_check_branch
        %151 = sbr.rel (%p149) target = $region16
      $region15: #{tpu_custom_call.1} parent=5 // pred_region
        // Predicated region
        $region17: #{tpu_custom_call.1} parent=15 // pred_check
          %p152 = pneg %p47
        $region18: #{tpu_custom_call.1} parent=15 // pred_check_branch
          %154 = sbr.rel (%p152) target = $region20
        $region19: #{tpu_custom_call.1} parent=15 // pred_region
          %p155 = scmp.lt.s32.totalorder %s22, 1
          %s156 = scalar_select %p155, %s22, 1
          %s157 = smul.addr %s156, 12
          %s158 = smul.addr %s157, 8
          %s159 = scalar_lea.vmem %s0, %s158
        $region20: #{tpu_custom_call.1} parent=15 // pred_fallthru
          _
        // Predicated region
        $region21: #{tpu_custom_call.1} parent=15 // pred_check
          %p160 = pneg %p73
        $region22: #{tpu_custom_call.1} parent=15 // pred_check_branch
          %162 = sbr.rel (%p160) target = $region24
        $region23: #{tpu_custom_call.1} parent=15 // pred_region
          %s163 = sand.u32 %s63, 1
          %s164 = scalar_lea.sflag [#allocation5], %s163
          %s165 = sand.u32 %s63, 1
          %s166 = smul.addr %s165, 192
          %s167 = scalar_lea.vmem [#allocation4], %s166
          %s168 = smul.u32 12, %s23
          %s170 = ssub.s32 3072, 3072
          %171 = vsyncadd %s164, %s170
          %s172 = smul.addr %s168, 4
          %s173 = smul.addr %s172, 64
          %s174 = scalar_lea.hbm %s1, %s173
          %s175 = sshll.u32 %s167, 4
          %s176 = int_to_ptr.vmem [resolvable:$true] %s175
          %181 = dma.hbm_to_vmem [thread:$0]  %s174, 3072, %s176, %s164, 256, 256, 16
        $region24: #{tpu_custom_call.1} parent=15 // pred_fallthru
          _
        // Predicated region
        $region25: #{tpu_custom_call.1} parent=15 // pred_check
          %p182 = pneg %p99
        $region26: #{tpu_custom_call.1} parent=15 // pred_check_branch
          %184 = sbr.rel (%p182) target = $region28
        $region27: #{tpu_custom_call.1} parent=15 // pred_region
          %s185 = smul.u32 12, %s23
          %p186 = scmp.lt.s32.totalorder %s185, 23
          %s187 = scalar_select %p186, %s185, 23
          %s188 = smul.addr %s187, 8
          %s189 = scalar_lea.vmem %s2, %s188
          %s190 = smul.u32 12, %s23
        $region28: #{tpu_custom_call.1} parent=15 // pred_fallthru
          _
      $region16: #{tpu_custom_call.1} parent=5 // pred_fallthru
        _
      %p191 = scmp.le.s32.totalorder 1, %s15
      %p192 = scmp.lt.s32.totalorder %s15, 5
      %p193 = pnand %p191, %p192
      %p194 = pneg %p193
      // Predicated region
      $region29: #{tpu_custom_call.1} parent=5 // pred_check
        _
      $region30: #{tpu_custom_call.1} parent=5 // pred_check_branch
        %196 = sbr.rel (%p193) target = $region32
      $region31: #{tpu_custom_call.1} parent=5 // pred_region
        %s197 = ssub.s32 %s15, 1
        %s198 = sand.u32 %s66, 1
        %s199 = scalar_lea.sflag [#allocation5], %s198
        %s200 = sand.u32 %s66, 1
        %s201 = smul.addr %s200, 192
        %s202 = scalar_lea.vmem [#allocation4], %s201
        // Predicated region
        $region33: #{tpu_custom_call.1} parent=31 // pred_check
          %p203 = pneg %p79
        $region34: #{tpu_custom_call.1} parent=31 // pred_check_branch
          %205 = sbr.rel (%p203) target = $region36
        $region35: #{tpu_custom_call.1} parent=31 // pred_region
          %206 = dma.done %s199, 3072
        $region36: #{tpu_custom_call.1} parent=31 // pred_fallthru
          _
        %p207 = scmp.lt.s32.totalorder %s24, 1
        %s208 = scalar_select %p207, %s24, 1
        %s209 = smul.addr %s208, 12
        %s210 = smul.addr %s209, 8
        %s211 = scalar_lea.vmem %s0, %s210
        %p212 = pneg %p53
        %p213 = pneg %p50
        %s214 = sand.u32 %s66, 1
        %s215 = scalar_lea.sflag [#allocation5], %s214
        %s216 = sand.u32 %s66, 1
        %s217 = smul.addr %s216, 192
        %s218 = scalar_lea.vmem [#allocation4], %s217
        %p219 = pneg %p79
        %p220 = pneg %p76
        %s221 = smul.u32 12, %s25
        %p222 = scmp.lt.s32.totalorder %s221, 23
        %s223 = scalar_select %p222, %s221, 23
        %s224 = smul.addr %s223, 8
        %s225 = scalar_lea.vmem %s2, %s224
        %p226 = pneg %p105
        %p227 = pneg %p102
        %p228 = pneg %p133
        %p229 = pneg %p130
        %s230 = sand.u32 %s120, 1
        %s231 = scalar_lea.sflag [#allocation6], %s230
        %s232 = sand.u32 %s120, 1
        %s233 = smul.addr %s232, 192
        %s234 = scalar_lea.vmem [#allocation7], %s233
        %p235 = scmp.lt.s32.totalorder %s24, 1
        %s236 = scalar_select %p235, %s24, 1
        %s237 = smul.addr %s236, 12
        %s238 = smul.addr %s237, 8
        %s239 = scalar_lea.vmem %s0, %s238
        %s240 = smul.u32 12, %s25
        %s241 = smul.u32 12, %s25
        %p242 = scmp.lt.s32.totalorder %s241, 23
        %s243 = scalar_select %p242, %s241, 23
        %s244 = smul.addr %s243, 8
        %s245 = scalar_lea.vmem %s2, %s244
        %s246 = smul.u32 12, %s25
        %s247 = smul.u32 12, %s25
        %v251 = vlaneseq
        %v252 = vand.u32 %v251, 127
        %v253 = vadd.s32 %v252, 128
        %vm254 = vcmp.lt.s32.totalorder %v252, 0
        %v255 = vsub.s32 0, %v252
        %v256 = vsel %vm254, %v255, %v252
        %v257 = vshrl.u32 %v256, 4
        %v258 = vand.u32 %v256, 15
        %v259 = vsub.s32 0, %v258
        %v260 = vsel %vm254, %v259, %v258
        %vm261 = vcmp.lt.s32.totalorder %v253, 0
        %v262 = vsub.s32 0, %v253
        %v263 = vsel %vm261, %v262, %v253
        %v264 = vshrl.u32 %v263, 4
        %v265 = vand.u32 %v263, 15
        %v266 = vsub.s32 0, %v265
        %v267 = vsel %vm261, %v266, %v265
        %vm268 = vcmp.ne.s32.totalorder %v260, 0
        %vm269 = vcmp.ne.s32.totalorder %v267, 0
        %vm270 = vcmp.lt.s32.totalorder %v260, 0
        %vm271 = vcmp.lt.s32.totalorder %v267, 0
        %vm272 = vmand %vm270, %vm268
        %vm273 = vmand %vm271, %vm269
        %v274 = vadd.s32 %v260, 16
        %v275 = vadd.s32 %v267, 16
        %v276 = vsel %vm272, %v274, %v260
        %v277 = vsel %vm273, %v275, %v267
        %vm278 = vcmp.ge.s32.totalorder %v276, 1
        %vm279 = vcmp.ge.s32.totalorder %v277, 1
        %vm280 = vcmp.le.s32.totalorder %v276, 14
        %vm281 = vcmp.le.s32.totalorder %v277, 14
        %vm282 = vcmask 1044344
        %283 = vst.msk [vmem:[#allocation2] sm:$0xf] %vm282, 0
        %284 = vst.msk [vmem:[#allocation2 + $0x10] sm:$0xf] %vm282, 0
        %285 = vst.msk [vmem:[#allocation2 + $0x20] sm:$0xf] %vm282, 0
        %286 = vst.msk [vmem:[#allocation2 + $0x30] sm:$0xf] %vm282, 0
        %287 = vst.msk [vmem:[#allocation2 + $0x40] sm:$0xf] %vm282, 0
        %288 = vst.msk [vmem:[#allocation2 + $0x50] sm:$0xf] %vm282, 0
        %vm289 = vcmask 134144
        %290 = vst.msk [vmem:[#allocation2 + $0xc] sm:$0xf] %vm289, 0
        %291 = vst.msk [vmem:[#allocation2 + $0x1c] sm:$0xf] %vm289, 0
        %292 = vst.msk [vmem:[#allocation2 + $0x2c] sm:$0xf] %vm289, 0
        %293 = vst.msk [vmem:[#allocation2 + $0x3c] sm:$0xf] %vm289, 0
        %294 = vst.msk [vmem:[#allocation2 + $0x4c] sm:$0xf] %vm289, 0
        %295 = vst.msk [vmem:[#allocation2 + $0x5c] sm:$0xf] %vm289, 0
        %v296 = vld [vmem:[%s239] sm:$0xff]
        %v297 = vld [vmem:[%s239 + $0x8] sm:$0xff]
        %v298 = vld [vmem:[%s239 + $0x10] sm:$0xff]
        %v299 = vld [vmem:[%s239 + $0x18] sm:$0xff]
        %v300 = vld [vmem:[%s239 + $0x20] sm:$0xff]
        %v301 = vld [vmem:[%s239 + $0x28] sm:$0xff]
        %v302 = vld [vmem:[%s239 + $0x30] sm:$0xff]
        %v303 = vld [vmem:[%s239 + $0x38] sm:$0xff]
        %v304 = vld [vmem:[%s239 + $0x40] sm:$0xff]
        %v305 = vld [vmem:[%s239 + $0x48] sm:$0xff]
        %v306 = vld [vmem:[%s239 + $0x50] sm:$0xff]
        %v307 = vld [vmem:[%s239 + $0x58] sm:$0xff]
        %v308 = vpack.c.bf16 %v298, %v296
        %v309 = vpack.c.bf16 %v299, %v297
        %v310 = vpack.c.bf16 %v302, %v300
        %v311 = vpack.c.bf16 %v303, %v301
        %v312 = vpack.c.bf16 %v306, %v304
        %v313 = vpack.c.bf16 %v307, %v305
        %v320 = vunpack.c.l.b16 %v308
        %v321 = vunpack.c.l.b16 %v309
        %v322 = vunpack.c.h.b16 %v308
        %v323 = vunpack.c.h.b16 %v309
        %v324 = vunpack.c.l.b16 %v310
        %v325 = vunpack.c.l.b16 %v311
        %v326 = vunpack.c.h.b16 %v310
        %v327 = vunpack.c.h.b16 %v311
        %v328 = vunpack.c.l.b16 %v312
        %v329 = vunpack.c.l.b16 %v313
        %v330 = vunpack.c.h.b16 %v312
        %v331 = vunpack.c.h.b16 %v313
        %v332 = vpack.c.b16 %v321, %v320
        %v333 = vpack.c.b16 %v323, %v322
        %v334 = vpack.c.b16 %v325, %v324
        %v335 = vpack.c.b16 %v327, %v326
        %v336 = vpack.c.b16 %v329, %v328
        %v337 = vpack.c.b16 %v331, %v330
        %344 = vst [vmem:[#allocation2 + $0x4] sm:$0xff] %v332
        %345 = vst [vmem:[#allocation2 + $0x14] sm:$0xff] %v333
        %346 = vst [vmem:[#allocation2 + $0x24] sm:$0xff] %v334
        %347 = vst [vmem:[#allocation2 + $0x34] sm:$0xff] %v335
        %348 = vst [vmem:[#allocation2 + $0x44] sm:$0xff] %v336
        %349 = vst [vmem:[#allocation2 + $0x54] sm:$0xff] %v337
        %v350 = vld [vmem:[#allocation2] sm:$0xff]
        %v351 = vld [vmem:[#allocation2 + $0x8] sm:$0xf]
        %v352 = vld [vmem:[#allocation2 + $0x10] sm:$0xff]
        %v353 = vld [vmem:[#allocation2 + $0x18] sm:$0xf]
        %v354 = vld [vmem:[#allocation2 + $0x20] sm:$0xff]
        %v355 = vld [vmem:[#allocation2 + $0x28] sm:$0xf]
        %v356 = vld [vmem:[#allocation2 + $0x30] sm:$0xff]
        %v357 = vld [vmem:[#allocation2 + $0x38] sm:$0xf]
        %v358 = vld [vmem:[#allocation2 + $0x40] sm:$0xff]
        %v359 = vld [vmem:[#allocation2 + $0x48] sm:$0xf]
        %v360 = vld [vmem:[#allocation2 + $0x50] sm:$0xff]
        %v361 = vld [vmem:[#allocation2 + $0x58] sm:$0xf]
        %v362 = vsel %vm278, 1, 0
        %v363 = vsel %vm279, 1, 0
        %vm364 = vcmp.eq.s32.totalorder %v362, 1
        %vm365 = vcmp.eq.s32.totalorder %v363, 1
        %vm366 = vmpackc.low %vm365, %vm364
        %v367 = vsel %vm366, 65537, 0
        %368 = vrot.lane.b32.xlu0 %v367, 111
        %v369 = vpop.permute.xlu0 %368
        %v370 = vrot.slane %v369, 4
        %vm371 = vcmask 908288
        %v372 = vsel %vm371, %v370, %v369
        %vm373 = vcmp.ne.s16.totalorder %v372, 0
        %vm374 = vcmp.ne.s16.totalorder %v370, 0
        %v375 = vsel %vm373, %v350, 0
        %v376 = vsel %vm374, %v351, 0
        %v377 = vsel %vm373, %v352, 0
        %v378 = vsel %vm374, %v353, 0
        %v379 = vsel %vm373, %v354, 0
        %v380 = vsel %vm374, %v355, 0
        %v381 = vsel %vm373, %v356, 0
        %v382 = vsel %vm374, %v357, 0
        %v383 = vsel %vm373, %v358, 0
        %v384 = vsel %vm374, %v359, 0
        %v385 = vsel %vm373, %v360, 0
        %v386 = vsel %vm374, %v361, 0
        %399 = vrot.lane.b32.xlu0 %v375, 17
        %v400 = vpop.permute.xlu0 %399
        %401 = vrot.lane.b32.xlu0 %v376, 17
        %v402 = vpop.permute.xlu0 %401
        %403 = vrot.lane.b32.xlu0 %v377, 17
        %v404 = vpop.permute.xlu0 %403
        %405 = vrot.lane.b32.xlu0 %v378, 17
        %v406 = vpop.permute.xlu0 %405
        %407 = vrot.lane.b32.xlu0 %v379, 17
        %v408 = vpop.permute.xlu0 %407
        %409 = vrot.lane.b32.xlu0 %v380, 17
        %v410 = vpop.permute.xlu0 %409
        %411 = vrot.lane.b32.xlu0 %v381, 17
        %v412 = vpop.permute.xlu0 %411
        %413 = vrot.lane.b32.xlu0 %v382, 17
        %v414 = vpop.permute.xlu0 %413
        %415 = vrot.lane.b32.xlu0 %v383, 17
        %v416 = vpop.permute.xlu0 %415
        %417 = vrot.lane.b32.xlu0 %v384, 17
        %v418 = vpop.permute.xlu0 %417
        %419 = vrot.lane.b32.xlu0 %v385, 17
        %v420 = vpop.permute.xlu0 %419
        %421 = vrot.lane.b32.xlu0 %v386, 17
        %v422 = vpop.permute.xlu0 %421
        %v423 = vrot.slane %v400, 4
        %v424 = vrot.slane %v402, 4
        %v425 = vrot.slane %v404, 4
        %v426 = vrot.slane %v406, 4
        %v427 = vrot.slane %v408, 4
        %v428 = vrot.slane %v410, 4
        %v429 = vrot.slane %v412, 4
        %v430 = vrot.slane %v414, 4
        %v431 = vrot.slane %v416, 4
        %v432 = vrot.slane %v418, 4
        %v433 = vrot.slane %v420, 4
        %v434 = vrot.slane %v422, 4
        %vm435 = vcmask 1043456
        %v436 = vsel %vm435, %v423, %v424
        %vm437 = vcmask 138240
        %v438 = vsel %vm437, %v400, %v436
        %v439 = vsel %vm435, %v425, %v426
        %v440 = vsel %vm437, %v404, %v439
        %v441 = vsel %vm435, %v427, %v428
        %v442 = vsel %vm437, %v408, %v441
        %v443 = vsel %vm435, %v429, %v430
        %v444 = vsel %vm437, %v412, %v443
        %v445 = vsel %vm435, %v431, %v432
        %v446 = vsel %vm437, %v416, %v445
        %v447 = vsel %vm435, %v433, %v434
        %v448 = vsel %vm437, %v420, %v447
        %455 = vst [vmem:[#allocation3] sm:$0xff] %v438
        %456 = vst [vmem:[#allocation3 + $0x8] sm:$0xff] %v440
        %457 = vst [vmem:[#allocation3 + $0x10] sm:$0xff] %v442
        %458 = vst [vmem:[#allocation3 + $0x18] sm:$0xff] %v444
        %459 = vst [vmem:[#allocation3 + $0x20] sm:$0xff] %v446
        %460 = vst [vmem:[#allocation3 + $0x28] sm:$0xff] %v448
        %v461 = vld [vmem:[#allocation2] sm:$0xff]
        %v462 = vld [vmem:[#allocation2 + $0x8] sm:$0xf]
        %v463 = vld [vmem:[#allocation2 + $0x10] sm:$0xff]
        %v464 = vld [vmem:[#allocation2 + $0x18] sm:$0xf]
        %v465 = vld [vmem:[#allocation2 + $0x20] sm:$0xff]
        %v466 = vld [vmem:[#allocation2 + $0x28] sm:$0xf]
        %v467 = vld [vmem:[#allocation2 + $0x30] sm:$0xff]
        %v468 = vld [vmem:[#allocation2 + $0x38] sm:$0xf]
        %v469 = vld [vmem:[#allocation2 + $0x40] sm:$0xff]
        %v470 = vld [vmem:[#allocation2 + $0x48] sm:$0xf]
        %v471 = vld [vmem:[#allocation2 + $0x50] sm:$0xff]
        %v472 = vld [vmem:[#allocation2 + $0x58] sm:$0xf]
        %485 = vrot.lane.b32.xlu0 %v461, 16
        %v486 = vpop.permute.xlu0 %485
        %487 = vrot.lane.b32.xlu0 %v462, 16
        %v488 = vpop.permute.xlu0 %487
        %489 = vrot.lane.b32.xlu0 %v463, 16
        %v490 = vpop.permute.xlu0 %489
        %491 = vrot.lane.b32.xlu0 %v464, 16
        %v492 = vpop.permute.xlu0 %491
        %493 = vrot.lane.b32.xlu0 %v465, 16
        %v494 = vpop.permute.xlu0 %493
        %495 = vrot.lane.b32.xlu0 %v466, 16
        %v496 = vpop.permute.xlu0 %495
        %497 = vrot.lane.b32.xlu0 %v467, 16
        %v498 = vpop.permute.xlu0 %497
        %499 = vrot.lane.b32.xlu0 %v468, 16
        %v500 = vpop.permute.xlu0 %499
        %501 = vrot.lane.b32.xlu0 %v469, 16
        %v502 = vpop.permute.xlu0 %501
        %503 = vrot.lane.b32.xlu0 %v470, 16
        %v504 = vpop.permute.xlu0 %503
        %505 = vrot.lane.b32.xlu0 %v471, 16
        %v506 = vpop.permute.xlu0 %505
        %507 = vrot.lane.b32.xlu0 %v472, 16
        %v508 = vpop.permute.xlu0 %507
        %v509 = vrot.slane %v486, 4
        %v510 = vrot.slane %v488, 4
        %v511 = vrot.slane %v490, 4
        %v512 = vrot.slane %v492, 4
        %v513 = vrot.slane %v494, 4
        %v514 = vrot.slane %v496, 4
        %v515 = vrot.slane %v498, 4
        %v516 = vrot.slane %v500, 4
        %v517 = vrot.slane %v502, 4
        %v518 = vrot.slane %v504, 4
        %v519 = vrot.slane %v506, 4
        %v520 = vrot.slane %v508, 4
        %v521 = vsel %vm435, %v509, %v510
        %vm522 = vcmask 130048
        %v523 = vsel %vm522, %v486, %v521
        %v524 = vsel %vm435, %v511, %v512
        %v525 = vsel %vm522, %v490, %v524
        %v526 = vsel %vm435, %v513, %v514
        %v527 = vsel %vm522, %v494, %v526
        %v528 = vsel %vm435, %v515, %v516
        %v529 = vsel %vm522, %v498, %v528
        %v530 = vsel %vm435, %v517, %v518
        %v531 = vsel %vm522, %v502, %v530
        %v532 = vsel %vm435, %v519, %v520
        %v533 = vsel %vm522, %v506, %v532
        %540 = vst [vmem:[#allocation3 + $0x30] sm:$0xff] %v523
        %541 = vst [vmem:[#allocation3 + $0x38] sm:$0xff] %v525
        %542 = vst [vmem:[#allocation3 + $0x40] sm:$0xff] %v527
        %543 = vst [vmem:[#allocation3 + $0x48] sm:$0xff] %v529
        %544 = vst [vmem:[#allocation3 + $0x50] sm:$0xff] %v531
        %545 = vst [vmem:[#allocation3 + $0x58] sm:$0xff] %v533
        %v546 = vld [vmem:[#allocation2] sm:$0xff]
        %v547 = vld [vmem:[#allocation2 + $0x8] sm:$0xf]
        %v548 = vld [vmem:[#allocation2 + $0x10] sm:$0xff]
        %v549 = vld [vmem:[#allocation2 + $0x18] sm:$0xf]
        %v550 = vld [vmem:[#allocation2 + $0x20] sm:$0xff]
        %v551 = vld [vmem:[#allocation2 + $0x28] sm:$0xf]
        %v552 = vld [vmem:[#allocation2 + $0x30] sm:$0xff]
        %v553 = vld [vmem:[#allocation2 + $0x38] sm:$0xf]
        %v554 = vld [vmem:[#allocation2 + $0x40] sm:$0xff]
        %v555 = vld [vmem:[#allocation2 + $0x48] sm:$0xf]
        %v556 = vld [vmem:[#allocation2 + $0x50] sm:$0xff]
        %v557 = vld [vmem:[#allocation2 + $0x58] sm:$0xf]
        %v558 = vsel %vm280, 1, 0
        %v559 = vsel %vm281, 1, 0
        %vm560 = vcmp.eq.s32.totalorder %v558, 1
        %vm561 = vcmp.eq.s32.totalorder %v559, 1
        %vm562 = vmpackc.low %vm561, %vm560
        %v563 = vsel %vm562, 65537, 0
        %564 = vrot.lane.b32.xlu0 %v563, 113
        %v565 = vpop.permute.xlu0 %564
        %v566 = vrot.slane %v565, 4
        %vm567 = vcmask 924672
        %v568 = vsel %vm567, %v566, %v565
        %vm569 = vcmp.ne.s16.totalorder %v568, 0
        %vm570 = vcmp.ne.s16.totalorder %v566, 0
        %v571 = vsel %vm569, %v546, 0
        %v572 = vsel %vm570, %v547, 0
        %v573 = vsel %vm569, %v548, 0
        %v574 = vsel %vm570, %v549, 0
        %v575 = vsel %vm569, %v550, 0
        %v576 = vsel %vm570, %v551, 0
        %v577 = vsel %vm569, %v552, 0
        %v578 = vsel %vm570, %v553, 0
        %v579 = vsel %vm569, %v554, 0
        %v580 = vsel %vm570, %v555, 0
        %v581 = vsel %vm569, %v556, 0
        %v582 = vsel %vm570, %v557, 0
        %595 = vrot.lane.b32.xlu0 %v571, 15
        %v596 = vpop.permute.xlu0 %595
        %597 = vrot.lane.b32.xlu0 %v572, 15
        %v598 = vpop.permute.xlu0 %597
        %599 = vrot.lane.b32.xlu0 %v573, 15
        %v600 = vpop.permute.xlu0 %599
        %601 = vrot.lane.b32.xlu0 %v574, 15
        %v602 = vpop.permute.xlu0 %601
        %603 = vrot.lane.b32.xlu0 %v575, 15
        %v604 = vpop.permute.xlu0 %603
        %605 = vrot.lane.b32.xlu0 %v576, 15
        %v606 = vpop.permute.xlu0 %605
        %607 = vrot.lane.b32.xlu0 %v577, 15
        %v608 = vpop.permute.xlu0 %607
        %609 = vrot.lane.b32.xlu0 %v578, 15
        %v610 = vpop.permute.xlu0 %609
        %611 = vrot.lane.b32.xlu0 %v579, 15
        %v612 = vpop.permute.xlu0 %611
        %613 = vrot.lane.b32.xlu0 %v580, 15
        %v614 = vpop.permute.xlu0 %613
        %615 = vrot.lane.b32.xlu0 %v581, 15
        %v616 = vpop.permute.xlu0 %615
        %617 = vrot.lane.b32.xlu0 %v582, 15
        %v618 = vpop.permute.xlu0 %617
        %v619 = vrot.slane %v596, 4
        %v620 = vrot.slane %v598, 4
        %v621 = vrot.slane %v600, 4
        %v622 = vrot.slane %v602, 4
        %v623 = vrot.slane %v604, 4
        %v624 = vrot.slane %v606, 4
        %v625 = vrot.slane %v608, 4
        %v626 = vrot.slane %v610, 4
        %v627 = vrot.slane %v612, 4
        %v628 = vrot.slane %v614, 4
        %v629 = vrot.slane %v616, 4
        %v630 = vrot.slane %v618, 4
        %v631 = vsel %vm435, %v619, %v620
        %vm632 = vcmask 121856
        %v633 = vsel %vm632, %v596, %v631
        %v634 = vsel %vm435, %v621, %v622
        %v635 = vsel %vm632, %v600, %v634
        %v636 = vsel %vm435, %v623, %v624
        %v637 = vsel %vm632, %v604, %v636
        %v638 = vsel %vm435, %v625, %v626
        %v639 = vsel %vm632, %v608, %v638
        %v640 = vsel %vm435, %v627, %v628
        %v641 = vsel %vm632, %v612, %v640
        %v642 = vsel %vm435, %v629, %v630
        %v643 = vsel %vm632, %v616, %v642
        %650 = vst [vmem:[#allocation3 + $0x60] sm:$0xff] %v633
        %651 = vst [vmem:[#allocation3 + $0x68] sm:$0xff] %v635
        %652 = vst [vmem:[#allocation3 + $0x70] sm:$0xff] %v637
        %653 = vst [vmem:[#allocation3 + $0x78] sm:$0xff] %v639
        %654 = vst [vmem:[#allocation3 + $0x80] sm:$0xff] %v641
        %655 = vst [vmem:[#allocation3 + $0x88] sm:$0xff] %v643
        %v656 = vld [vmem:[#allocation2] sm:$0xff]
        %v657 = vld [vmem:[#allocation2 + $0x8] sm:$0xf]
        %v658 = vld [vmem:[#allocation2 + $0x10] sm:$0xff]
        %v659 = vld [vmem:[#allocation2 + $0x18] sm:$0xf]
        %v660 = vld [vmem:[#allocation2 + $0x20] sm:$0xff]
        %v661 = vld [vmem:[#allocation2 + $0x28] sm:$0xf]
        %v662 = vld [vmem:[#allocation2 + $0x30] sm:$0xff]
        %v663 = vld [vmem:[#allocation2 + $0x38] sm:$0xf]
        %v664 = vld [vmem:[#allocation2 + $0x40] sm:$0xff]
        %v665 = vld [vmem:[#allocation2 + $0x48] sm:$0xf]
        %v666 = vld [vmem:[#allocation2 + $0x50] sm:$0xff]
        %v667 = vld [vmem:[#allocation2 + $0x58] sm:$0xf]
        %668 = vrot.lane.b32.xlu0 %v367, 127
        %v669 = vpop.permute.xlu0 %668
        %v670 = vrot.slane %v669, 4
        %vm671 = vcmask 1039360
        %v672 = vsel %vm671, %v670, %v669
        %vm673 = vcmp.ne.s16.totalorder %v672, 0
        %vm674 = vcmp.ne.s16.totalorder %v670, 0
        %v675 = vsel %vm673, %v656, 0
        %v676 = vsel %vm674, %v657, 0
        %v677 = vsel %vm673, %v658, 0
        %v678 = vsel %vm674, %v659, 0
        %v679 = vsel %vm673, %v660, 0
        %v680 = vsel %vm674, %v661, 0
        %v681 = vsel %vm673, %v662, 0
        %v682 = vsel %vm674, %v663, 0
        %v683 = vsel %vm673, %v664, 0
        %v684 = vsel %vm674, %v665, 0
        %v685 = vsel %vm673, %v666, 0
        %v686 = vsel %vm674, %v667, 0
        %699 = vrot.lane.b32.xlu0 %v675, 1
        %v700 = vpop.permute.xlu0 %699
        %701 = vrot.lane.b32.xlu0 %v676, 1
        %v702 = vpop.permute.xlu0 %701
        %703 = vrot.lane.b32.xlu0 %v677, 1
        %v704 = vpop.permute.xlu0 %703
        %705 = vrot.lane.b32.xlu0 %v678, 1
        %v706 = vpop.permute.xlu0 %705
        %707 = vrot.lane.b32.xlu0 %v679, 1
        %v708 = vpop.permute.xlu0 %707
        %709 = vrot.lane.b32.xlu0 %v680, 1
        %v710 = vpop.permute.xlu0 %709
        %711 = vrot.lane.b32.xlu0 %v681, 1
        %v712 = vpop.permute.xlu0 %711
        %713 = vrot.lane.b32.xlu0 %v682, 1
        %v714 = vpop.permute.xlu0 %713
        %715 = vrot.lane.b32.xlu0 %v683, 1
        %v716 = vpop.permute.xlu0 %715
        %717 = vrot.lane.b32.xlu0 %v684, 1
        %v718 = vpop.permute.xlu0 %717
        %719 = vrot.lane.b32.xlu0 %v685, 1
        %v720 = vpop.permute.xlu0 %719
        %721 = vrot.lane.b32.xlu0 %v686, 1
        %v722 = vpop.permute.xlu0 %721
        %v723 = vrot.slane %v700, 4
        %v724 = vrot.slane %v702, 4
        %v725 = vrot.slane %v704, 4
        %v726 = vrot.slane %v706, 4
        %v727 = vrot.slane %v708, 4
        %v728 = vrot.slane %v710, 4
        %v729 = vrot.slane %v712, 4
        %v730 = vrot.slane %v714, 4
        %v731 = vrot.slane %v716, 4
        %v732 = vrot.slane %v718, 4
        %v733 = vrot.slane %v720, 4
        %v734 = vrot.slane %v722, 4
        %v735 = vsel %vm435, %v723, %v724
        %vm736 = vcmask 7168
        %v737 = vsel %vm736, %v700, %v735
        %v738 = vsel %vm435, %v725, %v726
        %v739 = vsel %vm736, %v704, %v738
        %v740 = vsel %vm435, %v727, %v728
        %v741 = vsel %vm736, %v708, %v740
        %v742 = vsel %vm435, %v729, %v730
        %v743 = vsel %vm736, %v712, %v742
        %v744 = vsel %vm435, %v731, %v732
        %v745 = vsel %vm736, %v716, %v744
        %v746 = vsel %vm435, %v733, %v734
        %v747 = vsel %vm736, %v720, %v746
        %754 = vst [vmem:[#allocation3 + $0x90] sm:$0xff] %v737
        %755 = vst [vmem:[#allocation3 + $0x98] sm:$0xff] %v739
        %756 = vst [vmem:[#allocation3 + $0xa0] sm:$0xff] %v741
        %757 = vst [vmem:[#allocation3 + $0xa8] sm:$0xff] %v743
        %758 = vst [vmem:[#allocation3 + $0xb0] sm:$0xff] %v745
        %759 = vst [vmem:[#allocation3 + $0xb8] sm:$0xff] %v747
        %v760 = vld [vmem:[#allocation2 + $0x4] sm:$0xff]
        %v761 = vld [vmem:[#allocation2 + $0x14] sm:$0xff]
        %v762 = vld [vmem:[#allocation2 + $0x24] sm:$0xff]
        %v763 = vld [vmem:[#allocation2 + $0x34] sm:$0xff]
        %v764 = vld [vmem:[#allocation2 + $0x44] sm:$0xff]
        %v765 = vld [vmem:[#allocation2 + $0x54] sm:$0xff]
        %766 = vst [vmem:[#allocation3 + $0xc0] sm:$0xff] %v760
        %767 = vst [vmem:[#allocation3 + $0xc8] sm:$0xff] %v761
        %768 = vst [vmem:[#allocation3 + $0xd0] sm:$0xff] %v762
        %769 = vst [vmem:[#allocation3 + $0xd8] sm:$0xff] %v763
        %770 = vst [vmem:[#allocation3 + $0xe0] sm:$0xff] %v764
        %771 = vst [vmem:[#allocation3 + $0xe8] sm:$0xff] %v765
        %v772 = vld [vmem:[#allocation2 + $0x4] sm:$0xff]
        %v773 = vld [vmem:[#allocation2 + $0xc] sm:$0xf]
        %v774 = vld [vmem:[#allocation2 + $0x14] sm:$0xff]
        %v775 = vld [vmem:[#allocation2 + $0x1c] sm:$0xf]
        %v776 = vld [vmem:[#allocation2 + $0x24] sm:$0xff]
        %v777 = vld [vmem:[#allocation2 + $0x2c] sm:$0xf]
        %v778 = vld [vmem:[#allocation2 + $0x34] sm:$0xff]
        %v779 = vld [vmem:[#allocation2 + $0x3c] sm:$0xf]
        %v780 = vld [vmem:[#allocation2 + $0x44] sm:$0xff]
        %v781 = vld [vmem:[#allocation2 + $0x4c] sm:$0xf]
        %v782 = vld [vmem:[#allocation2 + $0x54] sm:$0xff]
        %v783 = vld [vmem:[#allocation2 + $0x5c] sm:$0xf]
        %784 = vrot.lane.b32.xlu0 %v563, 1
        %v785 = vpop.permute.xlu0 %784
        %v786 = vrot.slane %v785, 4
        %v787 = vsel %vm736, %v786, %v785
        %vm788 = vcmp.ne.s16.totalorder %v787, 0
        %vm789 = vcmp.ne.s16.totalorder %v786, 0
        %v790 = vsel %vm788, %v772, 0
        %v791 = vsel %vm789, %v773, 0
        %v792 = vsel %vm788, %v774, 0
        %v793 = vsel %vm789, %v775, 0
        %v794 = vsel %vm788, %v776, 0
        %v795 = vsel %vm789, %v777, 0
        %v796 = vsel %vm788, %v778, 0
        %v797 = vsel %vm789, %v779, 0
        %v798 = vsel %vm788, %v780, 0
        %v799 = vsel %vm789, %v781, 0
        %v800 = vsel %vm788, %v782, 0
        %v801 = vsel %vm789, %v783, 0
        %814 = vrot.lane.b32.xlu0 %v790, 127
        %v815 = vpop.permute.xlu0 %814
        %816 = vrot.lane.b32.xlu0 %v791, 127
        %v817 = vpop.permute.xlu0 %816
        %818 = vrot.lane.b32.xlu0 %v792, 127
        %v819 = vpop.permute.xlu0 %818
        %820 = vrot.lane.b32.xlu0 %v793, 127
        %v821 = vpop.permute.xlu0 %820
        %822 = vrot.lane.b32.xlu0 %v794, 127
        %v823 = vpop.permute.xlu0 %822
        %824 = vrot.lane.b32.xlu0 %v795, 127
        %v825 = vpop.permute.xlu0 %824
        %826 = vrot.lane.b32.xlu0 %v796, 127
        %v827 = vpop.permute.xlu0 %826
        %828 = vrot.lane.b32.xlu0 %v797, 127
        %v829 = vpop.permute.xlu0 %828
        %830 = vrot.lane.b32.xlu0 %v798, 127
        %v831 = vpop.permute.xlu0 %830
        %832 = vrot.lane.b32.xlu0 %v799, 127
        %v833 = vpop.permute.xlu0 %832
        %834 = vrot.lane.b32.xlu0 %v800, 127
        %v835 = vpop.permute.xlu0 %834
        %836 = vrot.lane.b32.xlu0 %v801, 127
        %v837 = vpop.permute.xlu0 %836
        %v838 = vrot.slane %v815, 4
        %v839 = vrot.slane %v817, 4
        %v840 = vrot.slane %v819, 4
        %v841 = vrot.slane %v821, 4
        %v842 = vrot.slane %v823, 4
        %v843 = vrot.slane %v825, 4
        %v844 = vrot.slane %v827, 4
        %v845 = vrot.slane %v829, 4
        %v846 = vrot.slane %v831, 4
        %v847 = vrot.slane %v833, 4
        %v848 = vrot.slane %v835, 4
        %v849 = vrot.slane %v837, 4
        %v850 = vsel %vm435, %v838, %v839
        %v851 = vsel %vm671, %v815, %v850
        %v852 = vsel %vm435, %v840, %v841
        %v853 = vsel %vm671, %v819, %v852
        %v854 = vsel %vm435, %v842, %v843
        %v855 = vsel %vm671, %v823, %v854
        %v856 = vsel %vm435, %v844, %v845
        %v857 = vsel %vm671, %v827, %v856
        %v858 = vsel %vm435, %v846, %v847
        %v859 = vsel %vm671, %v831, %v858
        %v860 = vsel %vm435, %v848, %v849
        %v861 = vsel %vm671, %v835, %v860
        %868 = vst [vmem:[#allocation3 + $0xf0] sm:$0xff] %v851
        %869 = vst [vmem:[#allocation3 + $0xf8] sm:$0xff] %v853
        %870 = vst [vmem:[#allocation3 + $0x100] sm:$0xff] %v855
        %871 = vst [vmem:[#allocation3 + $0x108] sm:$0xff] %v857
        %872 = vst [vmem:[#allocation3 + $0x110] sm:$0xff] %v859
        %873 = vst [vmem:[#allocation3 + $0x118] sm:$0xff] %v861
        %v874 = vld [vmem:[#allocation2 + $0x4] sm:$0xff]
        %v875 = vld [vmem:[#allocation2 + $0xc] sm:$0xf]
        %v876 = vld [vmem:[#allocation2 + $0x14] sm:$0xff]
        %v877 = vld [vmem:[#allocation2 + $0x1c] sm:$0xf]
        %v878 = vld [vmem:[#allocation2 + $0x24] sm:$0xff]
        %v879 = vld [vmem:[#allocation2 + $0x2c] sm:$0xf]
        %v880 = vld [vmem:[#allocation2 + $0x34] sm:$0xff]
        %v881 = vld [vmem:[#allocation2 + $0x3c] sm:$0xf]
        %v882 = vld [vmem:[#allocation2 + $0x44] sm:$0xff]
        %v883 = vld [vmem:[#allocation2 + $0x4c] sm:$0xf]
        %v884 = vld [vmem:[#allocation2 + $0x54] sm:$0xff]
        %v885 = vld [vmem:[#allocation2 + $0x5c] sm:$0xf]
        %886 = vrot.lane.b32.xlu0 %v367, 15
        %v887 = vpop.permute.xlu0 %886
        %v888 = vrot.slane %v887, 4
        %v889 = vsel %vm632, %v888, %v887
        %vm890 = vcmp.ne.s16.totalorder %v889, 0
        %vm891 = vcmp.ne.s16.totalorder %v888, 0
        %v892 = vsel %vm890, %v874, 0
        %v893 = vsel %vm891, %v875, 0
        %v894 = vsel %vm890, %v876, 0
        %v895 = vsel %vm891, %v877, 0
        %v896 = vsel %vm890, %v878, 0
        %v897 = vsel %vm891, %v879, 0
        %v898 = vsel %vm890, %v880, 0
        %v899 = vsel %vm891, %v881, 0
        %v900 = vsel %vm890, %v882, 0
        %v901 = vsel %vm891, %v883, 0
        %v902 = vsel %vm890, %v884, 0
        %v903 = vsel %vm891, %v885, 0
        %916 = vrot.lane.b32.xlu0 %v892, 113
        %v917 = vpop.permute.xlu0 %916
        %918 = vrot.lane.b32.xlu0 %v893, 113
        %v919 = vpop.permute.xlu0 %918
        %920 = vrot.lane.b32.xlu0 %v894, 113
        %v921 = vpop.permute.xlu0 %920
        %922 = vrot.lane.b32.xlu0 %v895, 113
        %v923 = vpop.permute.xlu0 %922
        %924 = vrot.lane.b32.xlu0 %v896, 113
        %v925 = vpop.permute.xlu0 %924
        %926 = vrot.lane.b32.xlu0 %v897, 113
        %v927 = vpop.permute.xlu0 %926
        %928 = vrot.lane.b32.xlu0 %v898, 113
        %v929 = vpop.permute.xlu0 %928
        %930 = vrot.lane.b32.xlu0 %v899, 113
        %v931 = vpop.permute.xlu0 %930
        %932 = vrot.lane.b32.xlu0 %v900, 113
        %v933 = vpop.permute.xlu0 %932
        %934 = vrot.lane.b32.xlu0 %v901, 113
        %v935 = vpop.permute.xlu0 %934
        %936 = vrot.lane.b32.xlu0 %v902, 113
        %v937 = vpop.permute.xlu0 %936
        %938 = vrot.lane.b32.xlu0 %v903, 113
        %v939 = vpop.permute.xlu0 %938
        %v940 = vrot.slane %v917, 4
        %v941 = vrot.slane %v919, 4
        %v942 = vrot.slane %v921, 4
        %v943 = vrot.slane %v923, 4
        %v944 = vrot.slane %v925, 4
        %v945 = vrot.slane %v927, 4
        %v946 = vrot.slane %v929, 4
        %v947 = vrot.slane %v931, 4
        %v948 = vrot.slane %v933, 4
        %v949 = vrot.slane %v935, 4
        %v950 = vrot.slane %v937, 4
        %v951 = vrot.slane %v939, 4
        %v952 = vsel %vm435, %v940, %v941
        %v953 = vsel %vm567, %v917, %v952
        %v954 = vsel %vm435, %v942, %v943
        %v955 = vsel %vm567, %v921, %v954
        %v956 = vsel %vm435, %v944, %v945
        %v957 = vsel %vm567, %v925, %v956
        %v958 = vsel %vm435, %v946, %v947
        %v959 = vsel %vm567, %v929, %v958
        %v960 = vsel %vm435, %v948, %v949
        %v961 = vsel %vm567, %v933, %v960
        %v962 = vsel %vm435, %v950, %v951
        %v963 = vsel %vm567, %v937, %v962
        %970 = vst [vmem:[#allocation3 + $0x120] sm:$0xff] %v953
        %971 = vst [vmem:[#allocation3 + $0x128] sm:$0xff] %v955
        %972 = vst [vmem:[#allocation3 + $0x130] sm:$0xff] %v957
        %973 = vst [vmem:[#allocation3 + $0x138] sm:$0xff] %v959
        %974 = vst [vmem:[#allocation3 + $0x140] sm:$0xff] %v961
        %975 = vst [vmem:[#allocation3 + $0x148] sm:$0xff] %v963
        %v976 = vld [vmem:[#allocation2 + $0x4] sm:$0xff]
        %v977 = vld [vmem:[#allocation2 + $0xc] sm:$0xf]
        %v978 = vld [vmem:[#allocation2 + $0x14] sm:$0xff]
        %v979 = vld [vmem:[#allocation2 + $0x1c] sm:$0xf]
        %v980 = vld [vmem:[#allocation2 + $0x24] sm:$0xff]
        %v981 = vld [vmem:[#allocation2 + $0x2c] sm:$0xf]
        %v982 = vld [vmem:[#allocation2 + $0x34] sm:$0xff]
        %v983 = vld [vmem:[#allocation2 + $0x3c] sm:$0xf]
        %v984 = vld [vmem:[#allocation2 + $0x44] sm:$0xff]
        %v985 = vld [vmem:[#allocation2 + $0x4c] sm:$0xf]
        %v986 = vld [vmem:[#allocation2 + $0x54] sm:$0xff]
        %v987 = vld [vmem:[#allocation2 + $0x5c] sm:$0xf]
        %1000 = vrot.lane.b32.xlu0 %v976, 112
        %v1001 = vpop.permute.xlu0 %1000
        %1002 = vrot.lane.b32.xlu0 %v977, 112
        %v1003 = vpop.permute.xlu0 %1002
        %1004 = vrot.lane.b32.xlu0 %v978, 112
        %v1005 = vpop.permute.xlu0 %1004
        %1006 = vrot.lane.b32.xlu0 %v979, 112
        %v1007 = vpop.permute.xlu0 %1006
        %1008 = vrot.lane.b32.xlu0 %v980, 112
        %v1009 = vpop.permute.xlu0 %1008
        %1010 = vrot.lane.b32.xlu0 %v981, 112
        %v1011 = vpop.permute.xlu0 %1010
        %1012 = vrot.lane.b32.xlu0 %v982, 112
        %v1013 = vpop.permute.xlu0 %1012
        %1014 = vrot.lane.b32.xlu0 %v983, 112
        %v1015 = vpop.permute.xlu0 %1014
        %1016 = vrot.lane.b32.xlu0 %v984, 112
        %v1017 = vpop.permute.xlu0 %1016
        %1018 = vrot.lane.b32.xlu0 %v985, 112
        %v1019 = vpop.permute.xlu0 %1018
        %1020 = vrot.lane.b32.xlu0 %v986, 112
        %v1021 = vpop.permute.xlu0 %1020
        %1022 = vrot.lane.b32.xlu0 %v987, 112
        %v1023 = vpop.permute.xlu0 %1022
        %v1024 = vrot.slane %v1001, 4
        %v1025 = vrot.slane %v1003, 4
        %v1026 = vrot.slane %v1005, 4
        %v1027 = vrot.slane %v1007, 4
        %v1028 = vrot.slane %v1009, 4
        %v1029 = vrot.slane %v1011, 4
        %v1030 = vrot.slane %v1013, 4
        %v1031 = vrot.slane %v1015, 4
        %v1032 = vrot.slane %v1017, 4
        %v1033 = vrot.slane %v1019, 4
        %v1034 = vrot.slane %v1021, 4
        %v1035 = vrot.slane %v1023, 4
        %v1036 = vsel %vm435, %v1024, %v1025
        %vm1037 = vcmask 916480
        %v1038 = vsel %vm1037, %v1001, %v1036
        %v1039 = vsel %vm435, %v1026, %v1027
        %v1040 = vsel %vm1037, %v1005, %v1039
        %v1041 = vsel %vm435, %v1028, %v1029
        %v1042 = vsel %vm1037, %v1009, %v1041
        %v1043 = vsel %vm435, %v1030, %v1031
        %v1044 = vsel %vm1037, %v1013, %v1043
        %v1045 = vsel %vm435, %v1032, %v1033
        %v1046 = vsel %vm1037, %v1017, %v1045
        %v1047 = vsel %vm435, %v1034, %v1035
        %v1048 = vsel %vm1037, %v1021, %v1047
        %1055 = vst [vmem:[#allocation3 + $0x150] sm:$0xff] %v1038
        %1056 = vst [vmem:[#allocation3 + $0x158] sm:$0xff] %v1040
        %1057 = vst [vmem:[#allocation3 + $0x160] sm:$0xff] %v1042
        %1058 = vst [vmem:[#allocation3 + $0x168] sm:$0xff] %v1044
        %1059 = vst [vmem:[#allocation3 + $0x170] sm:$0xff] %v1046
        %1060 = vst [vmem:[#allocation3 + $0x178] sm:$0xff] %v1048
        %v1061 = vld [vmem:[#allocation2 + $0x4] sm:$0xff]
        %v1062 = vld [vmem:[#allocation2 + $0xc] sm:$0xf]
        %v1063 = vld [vmem:[#allocation2 + $0x14] sm:$0xff]
        %v1064 = vld [vmem:[#allocation2 + $0x1c] sm:$0xf]
        %v1065 = vld [vmem:[#allocation2 + $0x24] sm:$0xff]
        %v1066 = vld [vmem:[#allocation2 + $0x2c] sm:$0xf]
        %v1067 = vld [vmem:[#allocation2 + $0x34] sm:$0xff]
        %v1068 = vld [vmem:[#allocation2 + $0x3c] sm:$0xf]
        %v1069 = vld [vmem:[#allocation2 + $0x44] sm:$0xff]
        %v1070 = vld [vmem:[#allocation2 + $0x4c] sm:$0xf]
        %v1071 = vld [vmem:[#allocation2 + $0x54] sm:$0xff]
        %v1072 = vld [vmem:[#allocation2 + $0x5c] sm:$0xf]
        %1073 = vrot.lane.b32.xlu0 %v563, 17
        %v1074 = vpop.permute.xlu0 %1073
        %v1075 = vrot.slane %v1074, 4
        %v1076 = vsel %vm437, %v1075, %v1074
        %vm1077 = vcmp.ne.s16.totalorder %v1076, 0
        %vm1078 = vcmp.ne.s16.totalorder %v1075, 0
        %v1079 = vsel %vm1077, %v1061, 0
        %v1080 = vsel %vm1078, %v1062, 0
        %v1081 = vsel %vm1077, %v1063, 0
        %v1082 = vsel %vm1078, %v1064, 0
        %v1083 = vsel %vm1077, %v1065, 0
        %v1084 = vsel %vm1078, %v1066, 0
        %v1085 = vsel %vm1077, %v1067, 0
        %v1086 = vsel %vm1078, %v1068, 0
        %v1087 = vsel %vm1077, %v1069, 0
        %v1088 = vsel %vm1078, %v1070, 0
        %v1089 = vsel %vm1077, %v1071, 0
        %v1090 = vsel %vm1078, %v1072, 0
        %1103 = vrot.lane.b32.xlu0 %v1079, 111
        %v1104 = vpop.permute.xlu0 %1103
        %1105 = vrot.lane.b32.xlu0 %v1080, 111
        %v1106 = vpop.permute.xlu0 %1105
        %1107 = vrot.lane.b32.xlu0 %v1081, 111
        %v1108 = vpop.permute.xlu0 %1107
        %1109 = vrot.lane.b32.xlu0 %v1082, 111
        %v1110 = vpop.permute.xlu0 %1109
        %1111 = vrot.lane.b32.xlu0 %v1083, 111
        %v1112 = vpop.permute.xlu0 %1111
        %1113 = vrot.lane.b32.xlu0 %v1084, 111
        %v1114 = vpop.permute.xlu0 %1113
        %1115 = vrot.lane.b32.xlu0 %v1085, 111
        %v1116 = vpop.permute.xlu0 %1115
        %1117 = vrot.lane.b32.xlu0 %v1086, 111
        %v1118 = vpop.permute.xlu0 %1117
        %1119 = vrot.lane.b32.xlu0 %v1087, 111
        %v1120 = vpop.permute.xlu0 %1119
        %1121 = vrot.lane.b32.xlu0 %v1088, 111
        %v1122 = vpop.permute.xlu0 %1121
        %1123 = vrot.lane.b32.xlu0 %v1089, 111
        %v1124 = vpop.permute.xlu0 %1123
        %1125 = vrot.lane.b32.xlu0 %v1090, 111
        %v1126 = vpop.permute.xlu0 %1125
        %v1127 = vrot.slane %v1104, 4
        %v1128 = vrot.slane %v1106, 4
        %v1129 = vrot.slane %v1108, 4
        %v1130 = vrot.slane %v1110, 4
        %v1131 = vrot.slane %v1112, 4
        %v1132 = vrot.slane %v1114, 4
        %v1133 = vrot.slane %v1116, 4
        %v1134 = vrot.slane %v1118, 4
        %v1135 = vrot.slane %v1120, 4
        %v1136 = vrot.slane %v1122, 4
        %v1137 = vrot.slane %v1124, 4
        %v1138 = vrot.slane %v1126, 4
        %v1139 = vsel %vm435, %v1127, %v1128
        %v1140 = vsel %vm371, %v1104, %v1139
        %v1141 = vsel %vm435, %v1129, %v1130
        %v1142 = vsel %vm371, %v1108, %v1141
        %v1143 = vsel %vm435, %v1131, %v1132
        %v1144 = vsel %vm371, %v1112, %v1143
        %v1145 = vsel %vm435, %v1133, %v1134
        %v1146 = vsel %vm371, %v1116, %v1145
        %v1147 = vsel %vm435, %v1135, %v1136
        %v1148 = vsel %vm371, %v1120, %v1147
        %v1149 = vsel %vm435, %v1137, %v1138
        %v1150 = vsel %vm371, %v1124, %v1149
        %1157 = vst [vmem:[#allocation3 + $0x180] sm:$0xff] %v1140
        %1158 = vst [vmem:[#allocation3 + $0x188] sm:$0xff] %v1142
        %1159 = vst [vmem:[#allocation3 + $0x190] sm:$0xff] %v1144
        %1160 = vst [vmem:[#allocation3 + $0x198] sm:$0xff] %v1146
        %1161 = vst [vmem:[#allocation3 + $0x1a0] sm:$0xff] %v1148
        %1162 = vst [vmem:[#allocation3 + $0x1a8] sm:$0xff] %v1150
        %v1163 = vld [vmem:[%s202] sm:$0xff]
        %v1164 = vld [vmem:[%s202 + $0x8] sm:$0xff]
        %v1165 = vld [vmem:[%s202 + $0x10] sm:$0xff]
        %v1166 = vld [vmem:[%s202 + $0x18] sm:$0xff]
        %v1167 = vld [vmem:[%s202 + $0x20] sm:$0xff]
        %v1168 = vld [vmem:[%s202 + $0x28] sm:$0xff]
        %v1169 = vld [vmem:[%s202 + $0x30] sm:$0xff]
        %v1170 = vld [vmem:[%s202 + $0x38] sm:$0xff]
        %v1171 = vld [vmem:[%s202 + $0x40] sm:$0xff]
        %v1172 = vld [vmem:[%s202 + $0x48] sm:$0xff]
        %v1173 = vld [vmem:[%s202 + $0x50] sm:$0xff]
        %v1174 = vld [vmem:[%s202 + $0x58] sm:$0xff]
        %v1175 = vld [vmem:[%s202 + $0x60] sm:$0xff]
        %v1176 = vld [vmem:[%s202 + $0x68] sm:$0xff]
        %v1177 = vld [vmem:[%s202 + $0x70] sm:$0xff]
        %v1178 = vld [vmem:[%s202 + $0x78] sm:$0xff]
        %v1179 = vld [vmem:[%s202 + $0x80] sm:$0xff]
        %v1180 = vld [vmem:[%s202 + $0x88] sm:$0xff]
        %v1181 = vld [vmem:[%s202 + $0x90] sm:$0xff]
        %v1182 = vld [vmem:[%s202 + $0x98] sm:$0xff]
        %v1183 = vld [vmem:[%s202 + $0xa0] sm:$0xff]
        %v1184 = vld [vmem:[%s202 + $0xa8] sm:$0xff]
        %v1185 = vld [vmem:[%s202 + $0xb0] sm:$0xff]
        %v1186 = vld [vmem:[%s202 + $0xb8] sm:$0xff]
        %v1187 = vld [vmem:[#allocation3] sm:$0xff]
        %v1188 = vld [vmem:[#allocation3 + $0x8] sm:$0xff]
        %v1189 = vld [vmem:[#allocation3 + $0x10] sm:$0xff]
        %v1190 = vld [vmem:[#allocation3 + $0x18] sm:$0xff]
        %v1191 = vld [vmem:[#allocation3 + $0x20] sm:$0xff]
        %v1192 = vld [vmem:[#allocation3 + $0x28] sm:$0xff]
        %v1193 = vld [vmem:[#allocation3 + $0x30] sm:$0xff]
        %v1194 = vld [vmem:[#allocation3 + $0x38] sm:$0xff]
        %v1195 = vld [vmem:[#allocation3 + $0x40] sm:$0xff]
        %v1196 = vld [vmem:[#allocation3 + $0x48] sm:$0xff]
        %v1197 = vld [vmem:[#allocation3 + $0x50] sm:$0xff]
        %v1198 = vld [vmem:[#allocation3 + $0x58] sm:$0xff]
        %v1199 = vld [vmem:[#allocation3 + $0x60] sm:$0xff]
        %v1200 = vld [vmem:[#allocation3 + $0x68] sm:$0xff]
        %v1201 = vld [vmem:[#allocation3 + $0x70] sm:$0xff]
        %v1202 = vld [vmem:[#allocation3 + $0x78] sm:$0xff]
        %v1203 = vld [vmem:[#allocation3 + $0x80] sm:$0xff]
        %v1204 = vld [vmem:[#allocation3 + $0x88] sm:$0xff]
        %v1205 = vld [vmem:[#allocation3 + $0x90] sm:$0xff]
        %v1206 = vld [vmem:[#allocation3 + $0x98] sm:$0xff]
        %v1207 = vld [vmem:[#allocation3 + $0xa0] sm:$0xff]
        %v1208 = vld [vmem:[#allocation3 + $0xa8] sm:$0xff]
        %v1209 = vld [vmem:[#allocation3 + $0xb0] sm:$0xff]
        %v1210 = vld [vmem:[#allocation3 + $0xb8] sm:$0xff]
        %v1211 = vld [vmem:[#allocation3 + $0xc0] sm:$0xff]
        %v1212 = vld [vmem:[#allocation3 + $0xc8] sm:$0xff]
        %v1213 = vld [vmem:[#allocation3 + $0xd0] sm:$0xff]
        %v1214 = vld [vmem:[#allocation3 + $0xd8] sm:$0xff]
        %v1215 = vld [vmem:[#allocation3 + $0xe0] sm:$0xff]
        %v1216 = vld [vmem:[#allocation3 + $0xe8] sm:$0xff]
        %v1217 = vld [vmem:[#allocation3 + $0xf0] sm:$0xff]
        %v1218 = vld [vmem:[#allocation3 + $0xf8] sm:$0xff]
        %v1219 = vld [vmem:[#allocation3 + $0x100] sm:$0xff]
        %v1220 = vld [vmem:[#allocation3 + $0x108] sm:$0xff]
        %v1221 = vld [vmem:[#allocation3 + $0x110] sm:$0xff]
        %v1222 = vld [vmem:[#allocation3 + $0x118] sm:$0xff]
        %v1223 = vld [vmem:[#allocation3 + $0x120] sm:$0xff]
        %v1224 = vld [vmem:[#allocation3 + $0x128] sm:$0xff]
        %v1225 = vld [vmem:[#allocation3 + $0x130] sm:$0xff]
        %v1226 = vld [vmem:[#allocation3 + $0x138] sm:$0xff]
        %v1227 = vld [vmem:[#allocation3 + $0x140] sm:$0xff]
        %v1228 = vld [vmem:[#allocation3 + $0x148] sm:$0xff]
        %v1229 = vld [vmem:[#allocation3 + $0x150] sm:$0xff]
        %v1230 = vld [vmem:[#allocation3 + $0x158] sm:$0xff]
        %v1231 = vld [vmem:[#allocation3 + $0x160] sm:$0xff]
        %v1232 = vld [vmem:[#allocation3 + $0x168] sm:$0xff]
        %v1233 = vld [vmem:[#allocation3 + $0x170] sm:$0xff]
        %v1234 = vld [vmem:[#allocation3 + $0x178] sm:$0xff]
        %v1235 = vld [vmem:[#allocation3 + $0x180] sm:$0xff]
        %v1236 = vld [vmem:[#allocation3 + $0x188] sm:$0xff]
        %v1237 = vld [vmem:[#allocation3 + $0x190] sm:$0xff]
        %v1238 = vld [vmem:[#allocation3 + $0x198] sm:$0xff]
        %v1239 = vld [vmem:[#allocation3 + $0x1a0] sm:$0xff]
        %v1240 = vld [vmem:[#allocation3 + $0x1a8] sm:$0xff]
        %v1241 = vld [vmem:[%s245] sm:$0xff]
        %v1242 = vld [vmem:[%s245 + $0x8] sm:$0xff]
        %v1243 = vld [vmem:[%s245 + $0x10] sm:$0xff]
        %v1244 = vld [vmem:[%s245 + $0x18] sm:$0xff]
        %v1245 = vld [vmem:[%s245 + $0x20] sm:$0xff]
        %v1246 = vld [vmem:[%s245 + $0x28] sm:$0xff]
        %v1247 = vld [vmem:[%s245 + $0x30] sm:$0xff]
        %v1248 = vld [vmem:[%s245 + $0x38] sm:$0xff]
        %v1249 = vld [vmem:[%s245 + $0x40] sm:$0xff]
        %v1250 = vld [vmem:[%s245 + $0x48] sm:$0xff]
        %v1251 = vld [vmem:[%s245 + $0x50] sm:$0xff]
        %v1252 = vld [vmem:[%s245 + $0x58] sm:$0xff]
        %1254 = vset.pattern.permute.xlu0 0
        %1255 = vperm.xlu0 %1254, %v1241
        %v1256 = vpop.permute.xlu0 %1255
        %1259 = vset.pattern.permute.xlu0 0
        %1260 = vperm.xlu0 %1259, %v1242
        %v1261 = vpop.permute.xlu0 %1260
        %1264 = vset.pattern.permute.xlu0 0
        %1265 = vperm.xlu0 %1264, %v1243
        %v1266 = vpop.permute.xlu0 %1265
        %1269 = vset.pattern.permute.xlu0 0
        %1270 = vperm.xlu0 %1269, %v1244
        %v1271 = vpop.permute.xlu0 %1270
        %1274 = vset.pattern.permute.xlu0 0
        %1275 = vperm.xlu0 %1274, %v1245
        %v1276 = vpop.permute.xlu0 %1275
        %1279 = vset.pattern.permute.xlu0 0
        %1280 = vperm.xlu0 %1279, %v1246
        %v1281 = vpop.permute.xlu0 %1280
        %1284 = vset.pattern.permute.xlu0 0
        %1285 = vperm.xlu0 %1284, %v1247
        %v1286 = vpop.permute.xlu0 %1285
        %1289 = vset.pattern.permute.xlu0 0
        %1290 = vperm.xlu0 %1289, %v1248
        %v1291 = vpop.permute.xlu0 %1290
        %1294 = vset.pattern.permute.xlu0 0
        %1295 = vperm.xlu0 %1294, %v1249
        %v1296 = vpop.permute.xlu0 %1295
        %1299 = vset.pattern.permute.xlu0 0
        %1300 = vperm.xlu0 %1299, %v1250
        %v1301 = vpop.permute.xlu0 %1300
        %1304 = vset.pattern.permute.xlu0 0
        %1305 = vperm.xlu0 %1304, %v1251
        %v1306 = vpop.permute.xlu0 %1305
        %1309 = vset.pattern.permute.xlu0 0
        %1310 = vperm.xlu0 %1309, %v1252
        %v1311 = vpop.permute.xlu0 %1310
        %v1337 = vunpack.c.l.b16 %v1163
        %v1338 = vunpack.c.h.b16 %v1163
        %v1339 = vunpack.c.l.b16 %v1164
        %v1340 = vunpack.c.h.b16 %v1164
        %v1341 = vunpack.c.l.b16 %v1165
        %v1342 = vunpack.c.h.b16 %v1165
        %v1343 = vunpack.c.l.b16 %v1166
        %v1344 = vunpack.c.h.b16 %v1166
        %v1345 = vunpack.c.l.b16 %v1167
        %v1346 = vunpack.c.h.b16 %v1167
        %v1347 = vunpack.c.l.b16 %v1168
        %v1348 = vunpack.c.h.b16 %v1168
        %v1349 = vunpack.c.l.b16 %v1169
        %v1350 = vunpack.c.h.b16 %v1169
        %v1351 = vunpack.c.l.b16 %v1170
        %v1352 = vunpack.c.h.b16 %v1170
        %v1353 = vunpack.c.l.b16 %v1171
        %v1354 = vunpack.c.h.b16 %v1171
        %v1355 = vunpack.c.l.b16 %v1172
        %v1356 = vunpack.c.h.b16 %v1172
        %v1357 = vunpack.c.l.b16 %v1173
        %v1358 = vunpack.c.h.b16 %v1173
        %v1359 = vunpack.c.l.b16 %v1174
        %v1360 = vunpack.c.h.b16 %v1174
        %v1361 = vunpack.c.l.b16 %v1175
        %v1362 = vunpack.c.h.b16 %v1175
        %v1363 = vunpack.c.l.b16 %v1176
        %v1364 = vunpack.c.h.b16 %v1176
        %v1365 = vunpack.c.l.b16 %v1177
        %v1366 = vunpack.c.h.b16 %v1177
        %v1367 = vunpack.c.l.b16 %v1178
        %v1368 = vunpack.c.h.b16 %v1178
        %v1369 = vunpack.c.l.b16 %v1179
        %v1370 = vunpack.c.h.b16 %v1179
        %v1371 = vunpack.c.l.b16 %v1180
        %v1372 = vunpack.c.h.b16 %v1180
        %v1373 = vunpack.c.l.b16 %v1181
        %v1374 = vunpack.c.h.b16 %v1181
        %v1375 = vunpack.c.l.b16 %v1182
        %v1376 = vunpack.c.h.b16 %v1182
        %v1377 = vunpack.c.l.b16 %v1183
        %v1378 = vunpack.c.h.b16 %v1183
        %v1379 = vunpack.c.l.b16 %v1184
        %v1380 = vunpack.c.h.b16 %v1184
        %v1381 = vunpack.c.l.b16 %v1185
        %v1382 = vunpack.c.h.b16 %v1185
        %v1383 = vunpack.c.l.b16 %v1186
        %v1384 = vunpack.c.h.b16 %v1186
        %v1385 = vpack.c.b16 %v1341, %v1337
        %v1386 = vpack.c.b16 %v1342, %v1338
        %v1387 = vpack.c.b16 %v1343, %v1339
        %v1388 = vpack.c.b16 %v1344, %v1340
        %v1389 = vpack.c.b16 %v1349, %v1345
        %v1390 = vpack.c.b16 %v1350, %v1346
        %v1391 = vpack.c.b16 %v1351, %v1347
        %v1392 = vpack.c.b16 %v1352, %v1348
        %v1393 = vpack.c.b16 %v1357, %v1353
        %v1394 = vpack.c.b16 %v1358, %v1354
        %v1395 = vpack.c.b16 %v1359, %v1355
        %v1396 = vpack.c.b16 %v1360, %v1356
        %v1397 = vpack.c.b16 %v1365, %v1361
        %v1398 = vpack.c.b16 %v1366, %v1362
        %v1399 = vpack.c.b16 %v1367, %v1363
        %v1400 = vpack.c.b16 %v1368, %v1364
        %v1401 = vpack.c.b16 %v1373, %v1369
        %v1402 = vpack.c.b16 %v1374, %v1370
        %v1403 = vpack.c.b16 %v1375, %v1371
        %v1404 = vpack.c.b16 %v1376, %v1372
        %v1405 = vpack.c.b16 %v1381, %v1377
        %v1406 = vpack.c.b16 %v1382, %v1378
        %v1407 = vpack.c.b16 %v1383, %v1379
        %v1408 = vpack.c.b16 %v1384, %v1380
        %v1481 = vunpack.c.l.b16 %v1187
        %v1482 = vunpack.c.h.b16 %v1187
        %v1483 = vunpack.c.l.b16 %v1188
        %v1484 = vunpack.c.h.b16 %v1188
        %v1485 = vunpack.c.l.b16 %v1189
        %v1486 = vunpack.c.h.b16 %v1189
        %v1487 = vunpack.c.l.b16 %v1190
        %v1488 = vunpack.c.h.b16 %v1190
        %v1489 = vunpack.c.l.b16 %v1191
        %v1490 = vunpack.c.h.b16 %v1191
        %v1491 = vunpack.c.l.b16 %v1192
        %v1492 = vunpack.c.h.b16 %v1192
        %v1493 = vunpack.c.l.b16 %v1193
        %v1494 = vunpack.c.h.b16 %v1193
        %v1495 = vunpack.c.l.b16 %v1194
        %v1496 = vunpack.c.h.b16 %v1194
        %v1497 = vunpack.c.l.b16 %v1195
        %v1498 = vunpack.c.h.b16 %v1195
        %v1499 = vunpack.c.l.b16 %v1196
        %v1500 = vunpack.c.h.b16 %v1196
        %v1501 = vunpack.c.l.b16 %v1197
        %v1502 = vunpack.c.h.b16 %v1197
        %v1503 = vunpack.c.l.b16 %v1198
        %v1504 = vunpack.c.h.b16 %v1198
        %v1505 = vunpack.c.l.b16 %v1199
        %v1506 = vunpack.c.h.b16 %v1199
        %v1507 = vunpack.c.l.b16 %v1200
        %v1508 = vunpack.c.h.b16 %v1200
        %v1509 = vunpack.c.l.b16 %v1201
        %v1510 = vunpack.c.h.b16 %v1201
        %v1511 = vunpack.c.l.b16 %v1202
        %v1512 = vunpack.c.h.b16 %v1202
        %v1513 = vunpack.c.l.b16 %v1203
        %v1514 = vunpack.c.h.b16 %v1203
        %v1515 = vunpack.c.l.b16 %v1204
        %v1516 = vunpack.c.h.b16 %v1204
        %v1517 = vunpack.c.l.b16 %v1205
        %v1518 = vunpack.c.h.b16 %v1205
        %v1519 = vunpack.c.l.b16 %v1206
        %v1520 = vunpack.c.h.b16 %v1206
        %v1521 = vunpack.c.l.b16 %v1207
        %v1522 = vunpack.c.h.b16 %v1207
        %v1523 = vunpack.c.l.b16 %v1208
        %v1524 = vunpack.c.h.b16 %v1208
        %v1525 = vunpack.c.l.b16 %v1209
        %v1526 = vunpack.c.h.b16 %v1209
        %v1527 = vunpack.c.l.b16 %v1210
        %v1528 = vunpack.c.h.b16 %v1210
        %v1529 = vunpack.c.l.b16 %v1211
        %v1530 = vunpack.c.h.b16 %v1211
        %v1531 = vunpack.c.l.b16 %v1212
        %v1532 = vunpack.c.h.b16 %v1212
        %v1533 = vunpack.c.l.b16 %v1213
        %v1534 = vunpack.c.h.b16 %v1213
        %v1535 = vunpack.c.l.b16 %v1214
        %v1536 = vunpack.c.h.b16 %v1214
        %v1537 = vunpack.c.l.b16 %v1215
        %v1538 = vunpack.c.h.b16 %v1215
        %v1539 = vunpack.c.l.b16 %v1216
        %v1540 = vunpack.c.h.b16 %v1216
        %v1541 = vunpack.c.l.b16 %v1217
        %v1542 = vunpack.c.h.b16 %v1217
        %v1543 = vunpack.c.l.b16 %v1218
        %v1544 = vunpack.c.h.b16 %v1218
        %v1545 = vunpack.c.l.b16 %v1219
        %v1546 = vunpack.c.h.b16 %v1219
        %v1547 = vunpack.c.l.b16 %v1220
        %v1548 = vunpack.c.h.b16 %v1220
        %v1549 = vunpack.c.l.b16 %v1221
        %v1550 = vunpack.c.h.b16 %v1221
        %v1551 = vunpack.c.l.b16 %v1222
        %v1552 = vunpack.c.h.b16 %v1222
        %v1553 = vunpack.c.l.b16 %v1223
        %v1554 = vunpack.c.h.b16 %v1223
        %v1555 = vunpack.c.l.b16 %v1224
        %v1556 = vunpack.c.h.b16 %v1224
        %v1557 = vunpack.c.l.b16 %v1225
        %v1558 = vunpack.c.h.b16 %v1225
        %v1559 = vunpack.c.l.b16 %v1226
        %v1560 = vunpack.c.h.b16 %v1226
        %v1561 = vunpack.c.l.b16 %v1227
        %v1562 = vunpack.c.h.b16 %v1227
        %v1563 = vunpack.c.l.b16 %v1228
        %v1564 = vunpack.c.h.b16 %v1228
        %v1565 = vunpack.c.l.b16 %v1229
        %v1566 = vunpack.c.h.b16 %v1229
        %v1567 = vunpack.c.l.b16 %v1230
        %v1568 = vunpack.c.h.b16 %v1230
        %v1569 = vunpack.c.l.b16 %v1231
        %v1570 = vunpack.c.h.b16 %v1231
        %v1571 = vunpack.c.l.b16 %v1232
        %v1572 = vunpack.c.h.b16 %v1232
        %v1573 = vunpack.c.l.b16 %v1233
        %v1574 = vunpack.c.h.b16 %v1233
        %v1575 = vunpack.c.l.b16 %v1234
        %v1576 = vunpack.c.h.b16 %v1234
        %v1577 = vunpack.c.l.b16 %v1235
        %v1578 = vunpack.c.h.b16 %v1235
        %v1579 = vunpack.c.l.b16 %v1236
        %v1580 = vunpack.c.h.b16 %v1236
        %v1581 = vunpack.c.l.b16 %v1237
        %v1582 = vunpack.c.h.b16 %v1237
        %v1583 = vunpack.c.l.b16 %v1238
        %v1584 = vunpack.c.h.b16 %v1238
        %v1585 = vunpack.c.l.b16 %v1239
        %v1586 = vunpack.c.h.b16 %v1239
        %v1587 = vunpack.c.l.b16 %v1240
        %v1588 = vunpack.c.h.b16 %v1240
        %v1589 = vpack.c.b16 %v1483, %v1481
        %v1590 = vpack.c.b16 %v1484, %v1482
        %v1591 = vpack.c.b16 %v1487, %v1485
        %v1592 = vpack.c.b16 %v1488, %v1486
        %v1593 = vpack.c.b16 %v1491, %v1489
        %v1594 = vpack.c.b16 %v1492, %v1490
        %v1595 = vpack.c.b16 %v1495, %v1493
        %v1596 = vpack.c.b16 %v1496, %v1494
        %v1597 = vpack.c.b16 %v1499, %v1497
        %v1598 = vpack.c.b16 %v1500, %v1498
        %v1599 = vpack.c.b16 %v1503, %v1501
        %v1600 = vpack.c.b16 %v1504, %v1502
        %v1601 = vpack.c.b16 %v1507, %v1505
        %v1602 = vpack.c.b16 %v1508, %v1506
        %v1603 = vpack.c.b16 %v1511, %v1509
        %v1604 = vpack.c.b16 %v1512, %v1510
        %v1605 = vpack.c.b16 %v1515, %v1513
        %v1606 = vpack.c.b16 %v1516, %v1514
        %v1607 = vpack.c.b16 %v1519, %v1517
        %v1608 = vpack.c.b16 %v1520, %v1518
        %v1609 = vpack.c.b16 %v1523, %v1521
        %v1610 = vpack.c.b16 %v1524, %v1522
        %v1611 = vpack.c.b16 %v1527, %v1525
        %v1612 = vpack.c.b16 %v1528, %v1526
        %v1613 = vpack.c.b16 %v1531, %v1529
        %v1614 = vpack.c.b16 %v1532, %v1530
        %v1615 = vpack.c.b16 %v1535, %v1533
        %v1616 = vpack.c.b16 %v1536, %v1534
        %v1617 = vpack.c.b16 %v1539, %v1537
        %v1618 = vpack.c.b16 %v1540, %v1538
        %v1619 = vpack.c.b16 %v1543, %v1541
        %v1620 = vpack.c.b16 %v1544, %v1542
        %v1621 = vpack.c.b16 %v1547, %v1545
        %v1622 = vpack.c.b16 %v1548, %v1546
        %v1623 = vpack.c.b16 %v1551, %v1549
        %v1624 = vpack.c.b16 %v1552, %v1550
        %v1625 = vpack.c.b16 %v1555, %v1553
        %v1626 = vpack.c.b16 %v1556, %v1554
        %v1627 = vpack.c.b16 %v1559, %v1557
        %v1628 = vpack.c.b16 %v1560, %v1558
        %v1629 = vpack.c.b16 %v1563, %v1561
        %v1630 = vpack.c.b16 %v1564, %v1562
        %v1631 = vpack.c.b16 %v1567, %v1565
        %v1632 = vpack.c.b16 %v1568, %v1566
        %v1633 = vpack.c.b16 %v1571, %v1569
        %v1634 = vpack.c.b16 %v1572, %v1570
        %v1635 = vpack.c.b16 %v1575, %v1573
        %v1636 = vpack.c.b16 %v1576, %v1574
        %v1637 = vpack.c.b16 %v1579, %v1577
        %v1638 = vpack.c.b16 %v1580, %v1578
        %v1639 = vpack.c.b16 %v1583, %v1581
        %v1640 = vpack.c.b16 %v1584, %v1582
        %v1641 = vpack.c.b16 %v1587, %v1585
        %v1642 = vpack.c.b16 %v1588, %v1586
        %vm1697 = vcmask 392192
        %v1699 = vsel %vm1697, %v1388, 0
        %v1702 = vsel %vm1697, %v1392, 0
        %v1705 = vsel %vm1697, %v1396, 0
        %v1708 = vsel %vm1697, %v1400, 0
        %v1711 = vsel %vm1697, %v1404, 0
        %v1714 = vsel %vm1697, %v1408, 0
        %1716 = vmatprep.subr.bf16.mxu0 %v1604
        %1717 = vmatpush1.bf16.msra.mxu0 %v1603
        %1718 = vmatprep.subr.bf16.mxu0 %v1602
        %1719 = vmatpush1.bf16.msra.mxu0 %v1601
        %1720 = vmatprep.subr.bf16.mxu0 %v1600
        %1721 = vmatpush1.bf16.msra.mxu0 %v1599
        %1722 = vmatprep.subr.bf16.mxu0 %v1598
        %1723 = vmatpush1.bf16.msra.mxu0 %v1597
        %1724 = vmatprep.subr.bf16.mxu0 %v1596
        %1725 = vmatpush1.bf16.msra.mxu0 %v1595
        %1726 = vmatprep.subr.bf16.mxu0 %v1594
        %1727 = vmatpush1.bf16.msra.mxu0 %v1593
        %1728 = vmatprep.subr.bf16.mxu0 %v1592
        %1729 = vmatpush1.bf16.msra.mxu0 %v1591
        %1730 = vmatprep.subr.bf16.mxu0 %v1590
        %1731 = vmatpush1.bf16.msra.mxu0 %v1589
        %1732 = vmatprep.subr.bf16.mxu0 %v1620
        %1733 = vmatpush2.bf16.msra.mxu0 %v1619
        %1734 = vmatprep.subr.bf16.mxu0 %v1618
        %1735 = vmatpush2.bf16.msra.mxu0 %v1617
        %1736 = vmatprep.subr.bf16.mxu0 %v1616
        %1737 = vmatpush2.bf16.msra.mxu0 %v1615
        %1738 = vmatprep.subr.bf16.mxu0 %v1614
        %1739 = vmatpush2.bf16.msra.mxu0 %v1613
        %1740 = vmatprep.subr.bf16.mxu0 %v1612
        %1741 = vmatpush2.bf16.msra.mxu0 %v1611
        %1742 = vmatprep.subr.bf16.mxu0 %v1610
        %1743 = vmatpush2.bf16.msra.mxu0 %v1609
        %1744 = vmatprep.subr.bf16.mxu0 %v1608
        %1745 = vmatpush2.bf16.msra.mxu0 %v1607
        %1746 = vmatprep.subr.bf16.mxu0 %v1606
        %1747 = vmatpush2.bf16.msra.mxu0 %v1605
        %1748 = vmatprep.mubr.bf16.mxu0 %v1386
        %1749 = vmatmul.mubr.bf16.gmra.mxu0 %v1385
        %v1750 = vpop.f32.mrf.mxu0
        %v1751 = vadd.f32 %v1256, %v1750
        %v1752 = vpop.f32.mrf.mxu0
        %v1753 = vadd.f32 %v1256, %v1752
        %v1754 = vpop.f32.mrf.mxu0
        %v1755 = vadd.f32 %v1261, %v1754
        %v1756 = vpop.f32.mrf.mxu0
        %v1757 = vadd.f32 %v1261, %v1756
        %1758 = vmatprep.mubr.bf16.mxu0 %v1390
        %1759 = vmatmul.mubr.bf16.gmra.mxu0 %v1389
        %v1760 = vpop.f32.mrf.mxu0
        %v1761 = vadd.f32 %v1266, %v1760
        %v1762 = vpop.f32.mrf.mxu0
        %v1763 = vadd.f32 %v1266, %v1762
        %v1764 = vpop.f32.mrf.mxu0
        %v1765 = vadd.f32 %v1271, %v1764
        %v1766 = vpop.f32.mrf.mxu0
        %v1767 = vadd.f32 %v1271, %v1766
        %1768 = vmatprep.mubr.bf16.mxu0 %v1394
        %1769 = vmatmul.mubr.bf16.gmra.mxu0 %v1393
        %v1770 = vpop.f32.mrf.mxu0
        %v1771 = vadd.f32 %v1276, %v1770
        %v1772 = vpop.f32.mrf.mxu0
        %v1773 = vadd.f32 %v1276, %v1772
        %v1774 = vpop.f32.mrf.mxu0
        %v1775 = vadd.f32 %v1281, %v1774
        %v1776 = vpop.f32.mrf.mxu0
        %v1777 = vadd.f32 %v1281, %v1776
        %1778 = vmatprep.mubr.bf16.mxu0 %v1398
        %1779 = vmatmul.mubr.bf16.gmra.mxu0 %v1397
        %v1780 = vpop.f32.mrf.mxu0
        %v1781 = vadd.f32 %v1286, %v1780
        %v1782 = vpop.f32.mrf.mxu0
        %v1783 = vadd.f32 %v1286, %v1782
        %v1784 = vpop.f32.mrf.mxu0
        %v1785 = vadd.f32 %v1291, %v1784
        %v1786 = vpop.f32.mrf.mxu0
        %v1787 = vadd.f32 %v1291, %v1786
        %1788 = vmatprep.mubr.bf16.mxu0 %v1402
        %1789 = vmatmul.mubr.bf16.gmra.mxu0 %v1401
        %v1790 = vpop.f32.mrf.mxu0
        %v1791 = vadd.f32 %v1296, %v1790
        %v1792 = vpop.f32.mrf.mxu0
        %v1793 = vadd.f32 %v1296, %v1792
        %v1794 = vpop.f32.mrf.mxu0
        %v1795 = vadd.f32 %v1301, %v1794
        %v1796 = vpop.f32.mrf.mxu0
        %v1797 = vadd.f32 %v1301, %v1796
        %1798 = vmatprep.mubr.bf16.mxu0 %v1406
        %1799 = vmatmul.mubr.bf16.gmra.mxu0 %v1405
        %v1800 = vpop.f32.mrf.mxu0
        %v1801 = vadd.f32 %v1306, %v1800
        %v1802 = vpop.f32.mrf.mxu0
        %v1803 = vadd.f32 %v1306, %v1802
        %v1804 = vpop.f32.mrf.mxu0
        %v1805 = vadd.f32 %v1311, %v1804
        %v1806 = vpop.f32.mrf.mxu0
        %v1807 = vadd.f32 %v1311, %v1806
        %1808 = vdwg.mxu0
        %1809 = vmatprep.subr.bf16.mxu0 %v1636
        %1810 = vmatpush1.bf16.msra.mxu0 %v1635
        %1811 = vmatprep.subr.bf16.mxu0 %v1634
        %1812 = vmatpush1.bf16.msra.mxu0 %v1633
        %1813 = vmatprep.subr.bf16.mxu0 %v1632
        %1814 = vmatpush1.bf16.msra.mxu0 %v1631
        %1815 = vmatprep.subr.bf16.mxu0 %v1630
        %1816 = vmatpush1.bf16.msra.mxu0 %v1629
        %1817 = vmatprep.subr.bf16.mxu0 %v1628
        %1818 = vmatpush1.bf16.msra.mxu0 %v1627
        %1819 = vmatprep.subr.bf16.mxu0 %v1626
        %1820 = vmatpush1.bf16.msra.mxu0 %v1625
        %1821 = vmatprep.subr.bf16.mxu0 %v1624
        %1822 = vmatpush1.bf16.msra.mxu0 %v1623
        %1823 = vmatprep.subr.bf16.mxu0 %v1622
        %1824 = vmatpush1.bf16.msra.mxu0 %v1621
        %1825 = vmatprep.subr.bf16.mxu0 0
        %1826 = vmatpush2.bf16.msra.mxu0 0
        %1827 = vmatprep.subr.bf16.mxu0 0
        %1828 = vmatpush2.bf16.msra.mxu0 0
        %1829 = vmatprep.subr.bf16.mxu0 0
        %1830 = vmatpush2.bf16.msra.mxu0 0
        %1831 = vmatprep.subr.bf16.mxu0 0
        %1832 = vmatpush2.bf16.msra.mxu0 0
        %1833 = vmatprep.subr.bf16.mxu0 0
        %1834 = vmatpush2.bf16.msra.mxu0 0
        %1835 = vmatprep.subr.bf16.mxu0 %v1642
        %1836 = vmatpush2.bf16.msra.mxu0 %v1641
        %1837 = vmatprep.subr.bf16.mxu0 %v1640
        %1838 = vmatpush2.bf16.msra.mxu0 %v1639
        %1839 = vmatprep.subr.bf16.mxu0 %v1638
        %1840 = vmatpush2.bf16.msra.mxu0 %v1637
        %1841 = vmatprep.mubr.bf16.mxu0 %v1699
        %1842 = vmatmul.mubr.bf16.gmra.mxu0 %v1387
        %v1843 = vpop.f32.mrf.mxu0
        %v1844 = vadd.f32 %v1751, %v1843
        %v1845 = vpop.f32.mrf.mxu0
        %v1846 = vadd.f32 %v1753, %v1845
        %v1847 = vpop.f32.mrf.mxu0
        %v1848 = vadd.f32 %v1755, %v1847
        %v1849 = vpop.f32.mrf.mxu0
        %v1850 = vadd.f32 %v1757, %v1849
        %1851 = vmatprep.mubr.bf16.mxu0 %v1702
        %1852 = vmatmul.mubr.bf16.gmra.mxu0 %v1391
        %v1853 = vpop.f32.mrf.mxu0
        %v1854 = vadd.f32 %v1761, %v1853
        %v1855 = vpop.f32.mrf.mxu0
        %v1856 = vadd.f32 %v1763, %v1855
        %v1857 = vpop.f32.mrf.mxu0
        %v1858 = vadd.f32 %v1765, %v1857
        %v1859 = vpop.f32.mrf.mxu0
        %v1860 = vadd.f32 %v1767, %v1859
        %1861 = vmatprep.mubr.bf16.mxu0 %v1705
        %1862 = vmatmul.mubr.bf16.gmra.mxu0 %v1395
        %v1863 = vpop.f32.mrf.mxu0
        %v1864 = vadd.f32 %v1771, %v1863
        %v1865 = vpop.f32.mrf.mxu0
        %v1866 = vadd.f32 %v1773, %v1865
        %v1867 = vpop.f32.mrf.mxu0
        %v1868 = vadd.f32 %v1775, %v1867
        %v1869 = vpop.f32.mrf.mxu0
        %v1870 = vadd.f32 %v1777, %v1869
        %1871 = vmatprep.mubr.bf16.mxu0 %v1708
        %1872 = vmatmul.mubr.bf16.gmra.mxu0 %v1399
        %v1873 = vpop.f32.mrf.mxu0
        %v1874 = vadd.f32 %v1781, %v1873
        %v1875 = vpop.f32.mrf.mxu0
        %v1876 = vadd.f32 %v1783, %v1875
        %v1877 = vpop.f32.mrf.mxu0
        %v1878 = vadd.f32 %v1785, %v1877
        %v1879 = vpop.f32.mrf.mxu0
        %v1880 = vadd.f32 %v1787, %v1879
        %1881 = vmatprep.mubr.bf16.mxu0 %v1711
        %1882 = vmatmul.mubr.bf16.gmra.mxu0 %v1403
        %v1883 = vpop.f32.mrf.mxu0
        %v1884 = vadd.f32 %v1791, %v1883
        %v1885 = vpop.f32.mrf.mxu0
        %v1886 = vadd.f32 %v1793, %v1885
        %v1887 = vpop.f32.mrf.mxu0
        %v1888 = vadd.f32 %v1795, %v1887
        %v1889 = vpop.f32.mrf.mxu0
        %v1890 = vadd.f32 %v1797, %v1889
        %1891 = vmatprep.mubr.bf16.mxu0 %v1714
        %1892 = vmatmul.mubr.bf16.gmra.mxu0 %v1407
        %v1893 = vpop.f32.mrf.mxu0
        %v1894 = vadd.f32 %v1801, %v1893
        %v1895 = vpop.f32.mrf.mxu0
        %v1896 = vadd.f32 %v1803, %v1895
        %v1897 = vpop.f32.mrf.mxu0
        %v1898 = vadd.f32 %v1805, %v1897
        %v1899 = vpop.f32.mrf.mxu0
        %v1900 = vadd.f32 %v1807, %v1899
        %1901 = vdwg.mxu0
        %1902 = vst [vmem:[%s234] sm:$0xff] %v1844
        %1903 = vst [vmem:[%s234 + $0x8] sm:$0xff] %v1846
        %1904 = vst [vmem:[%s234 + $0x10] sm:$0xff] %v1848
        %1905 = vst [vmem:[%s234 + $0x18] sm:$0xff] %v1850
        %1906 = vst [vmem:[%s234 + $0x20] sm:$0xff] %v1854
        %1907 = vst [vmem:[%s234 + $0x28] sm:$0xff] %v1856
        %1908 = vst [vmem:[%s234 + $0x30] sm:$0xff] %v1858
        %1909 = vst [vmem:[%s234 + $0x38] sm:$0xff] %v1860
        %1910 = vst [vmem:[%s234 + $0x40] sm:$0xff] %v1864
        %1911 = vst [vmem:[%s234 + $0x48] sm:$0xff] %v1866
        %1912 = vst [vmem:[%s234 + $0x50] sm:$0xff] %v1868
        %1913 = vst [vmem:[%s234 + $0x58] sm:$0xff] %v1870
        %1914 = vst [vmem:[%s234 + $0x60] sm:$0xff] %v1874
        %1915 = vst [vmem:[%s234 + $0x68] sm:$0xff] %v1876
        %1916 = vst [vmem:[%s234 + $0x70] sm:$0xff] %v1878
        %1917 = vst [vmem:[%s234 + $0x78] sm:$0xff] %v1880
        %1918 = vst [vmem:[%s234 + $0x80] sm:$0xff] %v1884
        %1919 = vst [vmem:[%s234 + $0x88] sm:$0xff] %v1886
        %1920 = vst [vmem:[%s234 + $0x90] sm:$0xff] %v1888
        %1921 = vst [vmem:[%s234 + $0x98] sm:$0xff] %v1890
        %1922 = vst [vmem:[%s234 + $0xa0] sm:$0xff] %v1894
        %1923 = vst [vmem:[%s234 + $0xa8] sm:$0xff] %v1896
        %1924 = vst [vmem:[%s234 + $0xb0] sm:$0xff] %v1898
        %1925 = vst [vmem:[%s234 + $0xb8] sm:$0xff] %v1900
        %s1926 = sand.u32 %s120, 1
        %s1927 = scalar_lea.sflag [#allocation6], %s1926
        %s1928 = sand.u32 %s120, 1
        %s1929 = smul.addr %s1928, 192
        %s1930 = scalar_lea.vmem [#allocation7], %s1929
        // Predicated region
        $region37: #{tpu_custom_call.1} parent=31 // pred_check
          %p1931 = pneg %p130
        $region38: #{tpu_custom_call.1} parent=31 // pred_check_branch
          %1933 = sbr.rel (%p1931) target = $region40
        $region39: #{tpu_custom_call.1} parent=31 // pred_region
          %s1934 = smul.u32 12, %s25
          %s1936 = ssub.s32 3072, 3072
          %1937 = vsyncadd %s1927, %s1936
          %s1938 = smul.addr %s1934, 2
          %s1939 = smul.addr %s24, 48
          %s1940 = sadd.s32 %s1938, %s1939
          %s1941 = smul.addr %s1940, 128
          %s1942 = scalar_lea.hbm %s3, %s1941
          %s1943 = sshll.u32 %s1930, 4
          %s1944 = int_to_ptr.vmem [resolvable:$true] %s1943
          %1949 = dma.vmem_to_hbm [thread:$0]  %s1944, 3072, %s1942, %s1927, 256, 256, 16
        $region40: #{tpu_custom_call.1} parent=31 // pred_fallthru
          _
      $region32: #{tpu_custom_call.1} parent=5 // pred_fallthru
        _
      %p1950 = scmp.le.s32.totalorder 2, %s15
      // Predicated region
      $region41: #{tpu_custom_call.1} parent=5 // pred_check
        %p1951 = pneg %p1950
      $region42: #{tpu_custom_call.1} parent=5 // pred_check_branch
        %1953 = sbr.rel (%p1951) target = $region44
      $region43: #{tpu_custom_call.1} parent=5 // pred_region
        %s1954 = ssub.s32 %s15, 2
        // Predicated region
        $region45: #{tpu_custom_call.1} parent=43 // pred_check
          %p1955 = pneg %p136
        $region46: #{tpu_custom_call.1} parent=43 // pred_check_branch
          %1957 = sbr.rel (%p1955) target = $region48
        $region47: #{tpu_custom_call.1} parent=43 // pred_region
          %s1958 = sand.u32 %s121, 1
          %s1959 = scalar_lea.sflag [#allocation6], %s1958
          %s1960 = sand.u32 %s121, 1
          %s1961 = smul.addr %s1960, 192
          %s1962 = scalar_lea.vmem [#allocation7], %s1961
          %1963 = dma.done %s1959, 3072
        $region48: #{tpu_custom_call.1} parent=43 // pred_fallthru
          _
      $region44: #{tpu_custom_call.1} parent=5 // pred_fallthru
        _
    $region6: #{tpu_custom_call.1} parent=1 // loop_footer
      %s19 = sadd.s32 1, %s15
    $region7: #{tpu_custom_call.1} parent=1 // loop_footer_branch
      %14 = sbr.rel target = $region3
    $region8: #{tpu_custom_call.1} parent=1 // loop_exit
      _
    %1964 = vsyncpa [#allocation5], 1
    %s1965 = scalar_lea.sflag [#allocation5], 1
    %1966 = vsyncpa %s1965, 1
    %1967 = vsyncpa [#allocation6], 1
    %s1968 = scalar_lea.sflag [#allocation6], 1
    %1969 = vsyncpa %s1968, 1

</llo_original>
